<compile_context>
chip_gen: v7x
topology: tpu7x:2x2x1
jax: 0.10.0
libtpu: 0.0.40
codegen_flags: <defaults>
</compile_context>

<pallas_src>
import math

import jax
import jax.numpy as jnp
from jax import lax
from jax.experimental import pallas as pl
from jax.experimental.pallas import tpu as pltpu

# ---- model dims (small, consistent with the module) ----
B = 2          # batch
S = 8          # sequence length
H = 32         # hidden_size
NH = 4         # num_attention_heads
HD = H // NH   # attention_head_size = 8
I = 64         # intermediate_size
BS = B * S     # flattened batch*sequence rows


def _layer_norm(x, gamma, beta, eps=1e-12):
    # x: (BS, D), gamma/beta: (1, D)
    u = jnp.mean(x, axis=-1, keepdims=True)
    s = jnp.mean((x - u) ** 2, axis=-1, keepdims=True)
    return gamma * ((x - u) / jnp.sqrt(s + eps)) + beta


def _gelu(x):
    return x * 0.5 * (1.0 + lax.erf(x / math.sqrt(2.0)))


def bert_layer_kernel(x_ref, mask_ref, wqkv_ref, wo_ref, wi_ref, w2_ref, p_ref,
                      out_ref):
    x = x_ref[...]          # (BS, H) f32
    mask = mask_ref[...]    # (BS, BS) additive mask (includes cross-batch block)
    p = p_ref[...]          # (8, 128) packed 1-D params

    # static slices out of the packed parameter slab
    bqkv = p[0:1, 0:3 * H]   # (1, 3H)
    bo   = p[1:2, 0:H]
    g1   = p[2:3, 0:H]
    be1  = p[3:4, 0:H]
    bi   = p[4:5, 0:I]
    b2   = p[5:6, 0:H]
    g2   = p[6:7, 0:H]
    be2  = p[7:8, 0:H]

    # ---- fused QKV projection: one (BS,H)@(H,3H) MXU push ----
    qkv = jnp.dot(x, wqkv_ref[...], preferred_element_type=jnp.float32) + bqkv

    scale = 1.0 / math.sqrt(HD)

    # ---- per-head attention on the folded (BS x BS) score matrix ----
    ctx_parts = []
    for h in range(NH):            # static unroll; only tiny per-head ops remain
        lo = h * HD
        q_h = qkv[:, lo:lo + HD]                    # (BS, HD)
        k_h = qkv[:, H + lo:H + lo + HD]            # (BS, HD)
        v_h = qkv[:, 2 * H + lo:2 * H + lo + HD]    # (BS, HD)

        scores = jnp.einsum("qd,kd->qk", q_h, k_h,
                            preferred_element_type=jnp.float32) * scale + mask
        m = jnp.max(scores, axis=-1, keepdims=True)
        e = jnp.exp(scores - m)
        probs = e / jnp.sum(e, axis=-1, keepdims=True)
        ctx_parts.append(jnp.dot(probs, v_h,
                                 preferred_element_type=jnp.float32))  # (BS, HD)

    ctx = jnp.concatenate(ctx_parts, axis=-1)       # (BS, H)

    # ---- BertSelfOutput: single output dense + residual + LayerNorm ----
    attn_dense = jnp.dot(ctx, wo_ref[...], preferred_element_type=jnp.float32) + bo
    attn_out = _layer_norm(attn_dense + x, g1, be1)

    # ---- BertIntermediate: dense + exact-erf GELU ----
    inter = _gelu(jnp.dot(attn_out, wi_ref[...],
                          preferred_element_type=jnp.float32) + bi)     # (BS, I)

    # ---- BertOutput: dense + residual + LayerNorm ----
    out2 = jnp.dot(inter, w2_ref[...], preferred_element_type=jnp.float32) + b2
    out_ref[...] = _layer_norm(out2 + attn_out, g2, be2).astype(out_ref.dtype)


def bert_layer(x, mask, params):
    """x: (B, S, H) f32, mask: (B, S) additive f32, params: dict (make_params)."""
    x2d = x.reshape(BS, H)

    # Combined additive mask: the original per-key mask inside each batch block,
    # and a large negative on cross-batch positions so folded batches never
    # attend to each other (exactly reproduces per-batch softmax).
    batch_id = jnp.arange(BS, dtype=jnp.int32) // S
    same_batch = batch_id[:, None] == batch_id[None, :]
    mask2d = jnp.where(same_batch, mask.reshape(BS)[None, :], -1e9)
    mask2d = mask2d.astype(jnp.float32)

    full = lambda shape: pl.BlockSpec(shape, lambda i: (0,) * len(shape))
    in_specs = [
        full((BS, H)),       # x slab
        full((BS, BS)),      # combined additive mask
        full((H, 3 * H)),    # fused Wqkv
        full((H, H)),        # Wo
        full((H, I)),        # Wi
        full((I, H)),        # W2
        full((8, 128)),      # packed 1-D params slab
    ]

    out2d = pl.pallas_call(
        bert_layer_kernel,
        out_shape=jax.ShapeDtypeStruct((BS, H), x.dtype),
        grid=(1,),                      # single step: whole problem is < 60 KB
        in_specs=in_specs,
        out_specs=full((BS, H)),
        compiler_params=pltpu.CompilerParams(
            dimension_semantics=("arbitrary",)),
    )(x2d, mask2d, params["wqkv"], params["wo"], params["wi"], params["w2"],
      params["pvec"])

    return out2d.reshape(B, S, H)


def make_params(key):
    ks = jax.random.split(key, 12)
    std = 0.02
    # nn.Linear weights in PyTorch are (out, in); stored here as (in, out).
    wq = jax.random.normal(ks[0], (H, H), jnp.float32) * std
    wk = jax.random.normal(ks[1], (H, H), jnp.float32) * std
    wv = jax.random.normal(ks[2], (H, H), jnp.float32) * std
    wo = jax.random.normal(ks[3], (H, H), jnp.float32) * std
    bq = jax.random.normal(ks[4], (H,), jnp.float32) * std
    bk = jax.random.normal(ks[5], (H,), jnp.float32) * std
    bv = jax.random.normal(ks[6], (H,), jnp.float32) * std
    bo = jax.random.normal(ks[7], (H,), jnp.float32) * std
    wi = jax.random.normal(ks[8], (H, I), jnp.float32) * std
    bi = jax.random.normal(ks[9], (I,), jnp.float32) * std
    w2 = jax.random.normal(ks[10], (I, H), jnp.float32) * std
    b2 = jax.random.normal(ks[11], (H,), jnp.float32) * std

    g1 = jnp.ones((H,), jnp.float32)
    be1 = jnp.zeros((H,), jnp.float32)
    g2 = jnp.ones((H,), jnp.float32)
    be2 = jnp.zeros((H,), jnp.float32)

    # Pack the 12 tiny 1-D params into a single (8, 128) lane-aligned slab.
    pvec = jnp.zeros((8, 128), jnp.float32)
    pvec = pvec.at[0, :3 * H].set(jnp.concatenate([bq, bk, bv]))
    pvec = pvec.at[1, :H].set(bo)
    pvec = pvec.at[2, :H].set(g1)
    pvec = pvec.at[3, :H].set(be1)
    pvec = pvec.at[4, :I].set(bi)
    pvec = pvec.at[5, :H].set(b2)
    pvec = pvec.at[6, :H].set(g2)
    pvec = pvec.at[7, :H].set(be2)

    params = {
        "wqkv": jnp.concatenate([wq, wk, wv], axis=1),  # (H, 3H)
        "wo": wo,        # (H, H)
        "wi": wi,        # (H, I)
        "w2": w2,        # (I, H)
        "pvec": pvec,    # (8, 128)
    }
    # un-fused versions for the pure-JAX reference
    dense = {"wq": wq, "bq": bq, "wk": wk, "bk": bk, "wv": wv, "bv": bv,
             "wo": wo, "bo": bo, "wi": wi, "bi": bi, "w2": w2, "b2": b2,
             "g1": g1, "be1": be1, "g2": g2, "be2": be2}
    return params, dense


def reference(x, mask, d):
    def ln(v, g, b, eps=1e-12):
        u = jnp.mean(v, -1, keepdims=True)
        s = jnp.mean((v - u) ** 2, -1, keepdims=True)
        return g * ((v - u) / jnp.sqrt(s + eps)) + b

    q = x @ d["wq"] + d["bq"]
    k = x @ d["wk"] + d["bk"]
    v = x @ d["wv"] + d["bv"]

    def split(t):
        return t.reshape(B, S, NH, HD).transpose(0, 2, 1, 3)  # (B, NH, S, HD)

    qh, kh, vh = split(q), split(k), split(v)
    scores = jnp.einsum("bhqd,bhkd->bhqk", qh, kh) / math.sqrt(HD)
    scores = scores + mask[:, None, None, :]
    probs = jax.nn.softmax(scores, axis=-1)
    ctx = jnp.einsum("bhqk,bhkd->bhqd", probs, vh)
    ctx = ctx.transpose(0, 2, 1, 3).reshape(B, S, H)
    attn_out = ln(ctx @ d["wo"] + d["bo"] + x, d["g1"], d["be1"])
    inter = attn_out @ d["wi"] + d["bi"]
    inter = inter * 0.5 * (1.0 + lax.erf(inter / math.sqrt(2.0)))
    out = ln(inter @ d["w2"] + d["b2"] + attn_out, d["g2"], d["be2"])
    return out


if __name__ == "__main__":
    key = jax.random.PRNGKey(0)
    kx, km, kp = jax.random.split(key, 3)

    x = jax.random.normal(kx, (B, S, H), jnp.float32)
    # additive attention mask: last 2 positions of batch 1 are padded
    keep = jnp.ones((B, S), jnp.float32).at[1, -2:].set(0.0)
    mask = (1.0 - keep) * -10000.0

    params, dense = make_params(kp)

    out = bert_layer(x, mask, params)
    out = jax.block_until_ready(out)

    ref = reference(x, mask, dense)
    assert out.shape == (B, S, H)
    assert jnp.allclose(out, ref, atol=1e-4, rtol=1e-4), \
        f"max err {jnp.max(jnp.abs(out - ref))}"

    print("KERNEL_OK")
</pallas_src>

<mosaic_0001>
module attributes {stable_mosaic.version = 11 : i64} {
  func.func @bert_layer_kernel(%arg0: i32, %arg1: memref<16x32xf32, #tpu.memory_space<vmem>>, %arg2: memref<16x16xf32, #tpu.memory_space<vmem>>, %arg3: memref<32x96xf32, #tpu.memory_space<vmem>>, %arg4: memref<32x32xf32, #tpu.memory_space<vmem>>, %arg5: memref<32x64xf32, #tpu.memory_space<vmem>>, %arg6: memref<64x32xf32, #tpu.memory_space<vmem>>, %arg7: memref<8x128xf32, #tpu.memory_space<vmem>>, %arg8: memref<16x32xf32, #tpu.memory_space<vmem>>) attributes {dimension_semantics = [#tpu.dimension_semantics<arbitrary>], iteration_bounds = array<i64: 1>, scalar_prefetch = 0 : i64, scratch_operands = 0 : i64, tpu.core_type = #tpu.core_type<tc>, window_params = [{pipeline_mode = #tpu.pipeline_mode<synchronous>, transform_indices = @transform_0, window_bounds = array<i64: 16, 32>}, {pipeline_mode = #tpu.pipeline_mode<synchronous>, transform_indices = @transform_1, window_bounds = array<i64: 16, 16>}, {pipeline_mode = #tpu.pipeline_mode<synchronous>, transform_indices = @transform_2, window_bounds = array<i64: 32, 96>}, {pipeline_mode = #tpu.pipeline_mode<synchronous>, transform_indices = @transform_3, window_bounds = array<i64: 32, 32>}, {pipeline_mode = #tpu.pipeline_mode<synchronous>, transform_indices = @transform_4, window_bounds = array<i64: 32, 64>}, {pipeline_mode = #tpu.pipeline_mode<synchronous>, transform_indices = @transform_5, window_bounds = array<i64: 64, 32>}, {pipeline_mode = #tpu.pipeline_mode<synchronous>, transform_indices = @transform_6, window_bounds = array<i64: 8, 128>}, {pipeline_mode = #tpu.pipeline_mode<synchronous>, transform_indices = @transform_7, window_bounds = array<i64: 16, 32>}]} {
    %c0 = arith.constant 0 : index
    %c0_0 = arith.constant 0 : index
    %0 = vector.load %arg1[%c0, %c0_0] : memref<16x32xf32, #tpu.memory_space<vmem>>, vector<16x32xf32>
    %c0_1 = arith.constant 0 : index
    %c0_2 = arith.constant 0 : index
    %1 = vector.load %arg2[%c0_1, %c0_2] : memref<16x16xf32, #tpu.memory_space<vmem>>, vector<16x16xf32>
    %c0_3 = arith.constant 0 : index
    %c0_4 = arith.constant 0 : index
    %2 = vector.load %arg7[%c0_3, %c0_4] : memref<8x128xf32, #tpu.memory_space<vmem>>, vector<8x128xf32>
    %3 = vector.extract_strided_slice %2 {offsets = [0, 0], sizes = [1, 96], strides = [1, 1]} : vector<8x128xf32> to vector<1x96xf32>
    %4 = vector.extract_strided_slice %2 {offsets = [1, 0], sizes = [1, 32], strides = [1, 1]} : vector<8x128xf32> to vector<1x32xf32>
    %5 = vector.extract_strided_slice %2 {offsets = [2, 0], sizes = [1, 32], strides = [1, 1]} : vector<8x128xf32> to vector<1x32xf32>
    %6 = vector.extract_strided_slice %2 {offsets = [3, 0], sizes = [1, 32], strides = [1, 1]} : vector<8x128xf32> to vector<1x32xf32>
    %7 = vector.extract_strided_slice %2 {offsets = [4, 0], sizes = [1, 64], strides = [1, 1]} : vector<8x128xf32> to vector<1x64xf32>
    %8 = vector.extract_strided_slice %2 {offsets = [5, 0], sizes = [1, 32], strides = [1, 1]} : vector<8x128xf32> to vector<1x32xf32>
    %9 = vector.extract_strided_slice %2 {offsets = [6, 0], sizes = [1, 32], strides = [1, 1]} : vector<8x128xf32> to vector<1x32xf32>
    %10 = vector.extract_strided_slice %2 {offsets = [7, 0], sizes = [1, 32], strides = [1, 1]} : vector<8x128xf32> to vector<1x32xf32>
    %c0_5 = arith.constant 0 : index
    %c0_6 = arith.constant 0 : index
    %11 = vector.load %arg3[%c0_5, %c0_6] : memref<32x96xf32, #tpu.memory_space<vmem>>, vector<32x96xf32>
    %cst = arith.constant dense<0.000000e+00> : vector<16x96xf32>
    %12 = tpu.matmul %0, %11, %cst {dimension_numbers = #tpu.dot_dimension_numbers<[1], [0], [0], [1], [0, 0, 1, 1], [], []>} : vector<16x32xf32>, vector<32x96xf32>, vector<16x96xf32> -> vector<16x96xf32>
    %13 = vector.broadcast %3 : vector<1x96xf32> to vector<16x96xf32>
    %14 = arith.addf %12, %13 : vector<16x96xf32>
    %15 = vector.extract_strided_slice %14 {offsets = [0, 0], sizes = [16, 8], strides = [1, 1]} : vector<16x96xf32> to vector<16x8xf32>
    %16 = vector.extract_strided_slice %14 {offsets = [0, 32], sizes = [16, 8], strides = [1, 1]} : vector<16x96xf32> to vector<16x8xf32>
    %17 = vector.extract_strided_slice %14 {offsets = [0, 64], sizes = [16, 8], strides = [1, 1]} : vector<16x96xf32> to vector<16x8xf32>
    "tpu.trace_start"() <{level = 10 : i32, message = "qd,kd->qk"}> : () -> ()
    %cst_7 = arith.constant dense<0.000000e+00> : vector<16x16xf32>
    %18 = tpu.matmul %15, %16, %cst_7 {dimension_numbers = #tpu.dot_dimension_numbers<[1], [1], [0], [0], [0, 0, 1, 0], [], []>} : vector<16x8xf32>, vector<16x8xf32>, vector<16x16xf32> -> vector<16x16xf32>
    "tpu.trace_stop"() : () -> ()
    %cst_8 = arith.constant 0.353553385 : f32
    %19 = vector.broadcast %cst_8 : f32 to vector<16x16xf32>
    %20 = arith.mulf %18, %19 : vector<16x16xf32>
    %21 = arith.addf %20, %1 : vector<16x16xf32>
    %cst_9 = arith.constant dense<0xFF800000> : vector<16xf32>
    %22 = vector.multi_reduction <maximumf>, %21, %cst_9 [1] : vector<16x16xf32> to vector<16xf32>
    %23 = vector.shape_cast %22 : vector<16xf32> to vector<16x1xf32>
    %24 = vector.broadcast %23 : vector<16x1xf32> to vector<16x16xf32>
    %25 = arith.subf %21, %24 : vector<16x16xf32>
    %26 = math.exp %25 : vector<16x16xf32>
    %cst_10 = arith.constant dense<0.000000e+00> : vector<16xf32>
    %27 = vector.multi_reduction <add>, %26, %cst_10 [1] : vector<16x16xf32> to vector<16xf32>
    %28 = vector.shape_cast %27 : vector<16xf32> to vector<16x1xf32>
    %29 = vector.broadcast %28 : vector<16x1xf32> to vector<16x16xf32>
    %30 = arith.divf %26, %29 : vector<16x16xf32>
    %cst_11 = arith.constant dense<0.000000e+00> : vector<16x8xf32>
    %31 = tpu.matmul %30, %17, %cst_11 {dimension_numbers = #tpu.dot_dimension_numbers<[1], [0], [0], [1], [0, 0, 1, 1], [], []>} : vector<16x16xf32>, vector<16x8xf32>, vector<16x8xf32> -> vector<16x8xf32>
    %32 = vector.extract_strided_slice %14 {offsets = [0, 8], sizes = [16, 8], strides = [1, 1]} : vector<16x96xf32> to vector<16x8xf32>
    %33 = vector.extract_strided_slice %14 {offsets = [0, 40], sizes = [16, 8], strides = [1, 1]} : vector<16x96xf32> to vector<16x8xf32>
    %34 = vector.extract_strided_slice %14 {offsets = [0, 72], sizes = [16, 8], strides = [1, 1]} : vector<16x96xf32> to vector<16x8xf32>
    "tpu.trace_start"() <{level = 10 : i32, message = "qd,kd->qk"}> : () -> ()
    %cst_12 = arith.constant dense<0.000000e+00> : vector<16x16xf32>
    %35 = tpu.matmul %32, %33, %cst_12 {dimension_numbers = #tpu.dot_dimension_numbers<[1], [1], [0], [0], [0, 0, 1, 0], [], []>} : vector<16x8xf32>, vector<16x8xf32>, vector<16x16xf32> -> vector<16x16xf32>
    "tpu.trace_stop"() : () -> ()
    %cst_13 = arith.constant 0.353553385 : f32
    %36 = vector.broadcast %cst_13 : f32 to vector<16x16xf32>
    %37 = arith.mulf %35, %36 : vector<16x16xf32>
    %38 = arith.addf %37, %1 : vector<16x16xf32>
    %cst_14 = arith.constant dense<0xFF800000> : vector<16xf32>
    %39 = vector.multi_reduction <maximumf>, %38, %cst_14 [1] : vector<16x16xf32> to vector<16xf32>
    %40 = vector.shape_cast %39 : vector<16xf32> to vector<16x1xf32>
    %41 = vector.broadcast %40 : vector<16x1xf32> to vector<16x16xf32>
    %42 = arith.subf %38, %41 : vector<16x16xf32>
    %43 = math.exp %42 : vector<16x16xf32>
    %cst_15 = arith.constant dense<0.000000e+00> : vector<16xf32>
    %44 = vector.multi_reduction <add>, %43, %cst_15 [1] : vector<16x16xf32> to vector<16xf32>
    %45 = vector.shape_cast %44 : vector<16xf32> to vector<16x1xf32>
    %46 = vector.broadcast %45 : vector<16x1xf32> to vector<16x16xf32>
    %47 = arith.divf %43, %46 : vector<16x16xf32>
    %cst_16 = arith.constant dense<0.000000e+00> : vector<16x8xf32>
    %48 = tpu.matmul %47, %34, %cst_16 {dimension_numbers = #tpu.dot_dimension_numbers<[1], [0], [0], [1], [0, 0, 1, 1], [], []>} : vector<16x16xf32>, vector<16x8xf32>, vector<16x8xf32> -> vector<16x8xf32>
    %49 = vector.extract_strided_slice %14 {offsets = [0, 16], sizes = [16, 8], strides = [1, 1]} : vector<16x96xf32> to vector<16x8xf32>
    %50 = vector.extract_strided_slice %14 {offsets = [0, 48], sizes = [16, 8], strides = [1, 1]} : vector<16x96xf32> to vector<16x8xf32>
    %51 = vector.extract_strided_slice %14 {offsets = [0, 80], sizes = [16, 8], strides = [1, 1]} : vector<16x96xf32> to vector<16x8xf32>
    "tpu.trace_start"() <{level = 10 : i32, message = "qd,kd->qk"}> : () -> ()
    %cst_17 = arith.constant dense<0.000000e+00> : vector<16x16xf32>
    %52 = tpu.matmul %49, %50, %cst_17 {dimension_numbers = #tpu.dot_dimension_numbers<[1], [1], [0], [0], [0, 0, 1, 0], [], []>} : vector<16x8xf32>, vector<16x8xf32>, vector<16x16xf32> -> vector<16x16xf32>
    "tpu.trace_stop"() : () -> ()
    %cst_18 = arith.constant 0.353553385 : f32
    %53 = vector.broadcast %cst_18 : f32 to vector<16x16xf32>
    %54 = arith.mulf %52, %53 : vector<16x16xf32>
    %55 = arith.addf %54, %1 : vector<16x16xf32>
    %cst_19 = arith.constant dense<0xFF800000> : vector<16xf32>
    %56 = vector.multi_reduction <maximumf>, %55, %cst_19 [1] : vector<16x16xf32> to vector<16xf32>
    %57 = vector.shape_cast %56 : vector<16xf32> to vector<16x1xf32>
    %58 = vector.broadcast %57 : vector<16x1xf32> to vector<16x16xf32>
    %59 = arith.subf %55, %58 : vector<16x16xf32>
    %60 = math.exp %59 : vector<16x16xf32>
    %cst_20 = arith.constant dense<0.000000e+00> : vector<16xf32>
    %61 = vector.multi_reduction <add>, %60, %cst_20 [1] : vector<16x16xf32> to vector<16xf32>
    %62 = vector.shape_cast %61 : vector<16xf32> to vector<16x1xf32>
    %63 = vector.broadcast %62 : vector<16x1xf32> to vector<16x16xf32>
    %64 = arith.divf %60, %63 : vector<16x16xf32>
    %cst_21 = arith.constant dense<0.000000e+00> : vector<16x8xf32>
    %65 = tpu.matmul %64, %51, %cst_21 {dimension_numbers = #tpu.dot_dimension_numbers<[1], [0], [0], [1], [0, 0, 1, 1], [], []>} : vector<16x16xf32>, vector<16x8xf32>, vector<16x8xf32> -> vector<16x8xf32>
    %66 = vector.extract_strided_slice %14 {offsets = [0, 24], sizes = [16, 8], strides = [1, 1]} : vector<16x96xf32> to vector<16x8xf32>
    %67 = vector.extract_strided_slice %14 {offsets = [0, 56], sizes = [16, 8], strides = [1, 1]} : vector<16x96xf32> to vector<16x8xf32>
    %68 = vector.extract_strided_slice %14 {offsets = [0, 88], sizes = [16, 8], strides = [1, 1]} : vector<16x96xf32> to vector<16x8xf32>
    "tpu.trace_start"() <{level = 10 : i32, message = "qd,kd->qk"}> : () -> ()
    %cst_22 = arith.constant dense<0.000000e+00> : vector<16x16xf32>
    %69 = tpu.matmul %66, %67, %cst_22 {dimension_numbers = #tpu.dot_dimension_numbers<[1], [1], [0], [0], [0, 0, 1, 0], [], []>} : vector<16x8xf32>, vector<16x8xf32>, vector<16x16xf32> -> vector<16x16xf32>
    "tpu.trace_stop"() : () -> ()
    %cst_23 = arith.constant 0.353553385 : f32
    %70 = vector.broadcast %cst_23 : f32 to vector<16x16xf32>
    %71 = arith.mulf %69, %70 : vector<16x16xf32>
    %72 = arith.addf %71, %1 : vector<16x16xf32>
    %cst_24 = arith.constant dense<0xFF800000> : vector<16xf32>
    %73 = vector.multi_reduction <maximumf>, %72, %cst_24 [1] : vector<16x16xf32> to vector<16xf32>
    %74 = vector.shape_cast %73 : vector<16xf32> to vector<16x1xf32>
    %75 = vector.broadcast %74 : vector<16x1xf32> to vector<16x16xf32>
    %76 = arith.subf %72, %75 : vector<16x16xf32>
    %77 = math.exp %76 : vector<16x16xf32>
    %cst_25 = arith.constant dense<0.000000e+00> : vector<16xf32>
    %78 = vector.multi_reduction <add>, %77, %cst_25 [1] : vector<16x16xf32> to vector<16xf32>
    %79 = vector.shape_cast %78 : vector<16xf32> to vector<16x1xf32>
    %80 = vector.broadcast %79 : vector<16x1xf32> to vector<16x16xf32>
    %81 = arith.divf %77, %80 : vector<16x16xf32>
    %cst_26 = arith.constant dense<0.000000e+00> : vector<16x8xf32>
    %82 = tpu.matmul %81, %68, %cst_26 {dimension_numbers = #tpu.dot_dimension_numbers<[1], [0], [0], [1], [0, 0, 1, 1], [], []>} : vector<16x16xf32>, vector<16x8xf32>, vector<16x8xf32> -> vector<16x8xf32>
    %83 = tpu.concatenate %31, %48, %65, %82 in 1 : vector<16x8xf32>, vector<16x8xf32>, vector<16x8xf32>, vector<16x8xf32> -> vector<16x32xf32>
    %c0_27 = arith.constant 0 : index
    %c0_28 = arith.constant 0 : index
    %84 = vector.load %arg4[%c0_27, %c0_28] : memref<32x32xf32, #tpu.memory_space<vmem>>, vector<32x32xf32>
    %cst_29 = arith.constant dense<0.000000e+00> : vector<16x32xf32>
    %85 = tpu.matmul %83, %84, %cst_29 {dimension_numbers = #tpu.dot_dimension_numbers<[1], [0], [0], [1], [0, 0, 1, 1], [], []>} : vector<16x32xf32>, vector<32x32xf32>, vector<16x32xf32> -> vector<16x32xf32>
    %86 = vector.broadcast %4 : vector<1x32xf32> to vector<16x32xf32>
    %87 = arith.addf %85, %86 : vector<16x32xf32>
    %88 = arith.addf %87, %0 : vector<16x32xf32>
    %cst_30 = arith.constant dense<0.000000e+00> : vector<16xf32>
    %89 = vector.multi_reduction <add>, %88, %cst_30 [1] : vector<16x32xf32> to vector<16xf32>
    %90 = vector.shape_cast %89 : vector<16xf32> to vector<16x1xf32>
    %cst_31 = arith.constant 3.200000e+01 : f32
    %91 = vector.broadcast %cst_31 : f32 to vector<16x1xf32>
    %92 = arith.divf %90, %91 : vector<16x1xf32>
    %93 = vector.broadcast %92 : vector<16x1xf32> to vector<16x32xf32>
    %94 = arith.subf %88, %93 : vector<16x32xf32>
    %95 = arith.mulf %94, %94 : vector<16x32xf32>
    %cst_32 = arith.constant dense<0.000000e+00> : vector<16xf32>
    %96 = vector.multi_reduction <add>, %95, %cst_32 [1] : vector<16x32xf32> to vector<16xf32>
    %97 = vector.shape_cast %96 : vector<16xf32> to vector<16x1xf32>
    %cst_33 = arith.constant 3.200000e+01 : f32
    %98 = vector.broadcast %cst_33 : f32 to vector<16x1xf32>
    %99 = arith.divf %97, %98 : vector<16x1xf32>
    %100 = vector.broadcast %92 : vector<16x1xf32> to vector<16x32xf32>
    %101 = arith.subf %88, %100 : vector<16x32xf32>
    %cst_34 = arith.constant 9.99999996E-13 : f32
    %102 = vector.broadcast %cst_34 : f32 to vector<16x1xf32>
    %103 = arith.addf %99, %102 : vector<16x1xf32>
    %104 = math.sqrt %103 : vector<16x1xf32>
    %105 = vector.broadcast %104 : vector<16x1xf32> to vector<16x32xf32>
    %106 = arith.divf %101, %105 : vector<16x32xf32>
    %107 = vector.broadcast %5 : vector<1x32xf32> to vector<16x32xf32>
    %108 = arith.mulf %107, %106 : vector<16x32xf32>
    %109 = vector.broadcast %6 : vector<1x32xf32> to vector<16x32xf32>
    %110 = arith.addf %108, %109 : vector<16x32xf32>
    %c0_35 = arith.constant 0 : index
    %c0_36 = arith.constant 0 : index
    %111 = vector.load %arg5[%c0_35, %c0_36] : memref<32x64xf32, #tpu.memory_space<vmem>>, vector<32x64xf32>
    %cst_37 = arith.constant dense<0.000000e+00> : vector<16x64xf32>
    %112 = tpu.matmul %110, %111, %cst_37 {dimension_numbers = #tpu.dot_dimension_numbers<[1], [0], [0], [1], [0, 0, 1, 1], [], []>} : vector<16x32xf32>, vector<32x64xf32>, vector<16x64xf32> -> vector<16x64xf32>
    %113 = vector.broadcast %7 : vector<1x64xf32> to vector<16x64xf32>
    %114 = arith.addf %112, %113 : vector<16x64xf32>
    %cst_38 = arith.constant 5.000000e-01 : f32
    %115 = vector.broadcast %cst_38 : f32 to vector<16x64xf32>
    %116 = arith.mulf %114, %115 : vector<16x64xf32>
    %cst_39 = arith.constant 1.41421354 : f32
    %117 = vector.broadcast %cst_39 : f32 to vector<16x64xf32>
    %118 = arith.divf %114, %117 : vector<16x64xf32>
    %119 = math.erf %118 : vector<16x64xf32>
    %cst_40 = arith.constant 1.000000e+00 : f32
    %120 = vector.broadcast %cst_40 : f32 to vector<16x64xf32>
    %121 = arith.addf %120, %119 : vector<16x64xf32>
    %122 = arith.mulf %116, %121 : vector<16x64xf32>
    %c0_41 = arith.constant 0 : index
    %c0_42 = arith.constant 0 : index
    %123 = vector.load %arg6[%c0_41, %c0_42] : memref<64x32xf32, #tpu.memory_space<vmem>>, vector<64x32xf32>
    %cst_43 = arith.constant dense<0.000000e+00> : vector<16x32xf32>
    %124 = tpu.matmul %122, %123, %cst_43 {dimension_numbers = #tpu.dot_dimension_numbers<[1], [0], [0], [1], [0, 0, 1, 1], [], []>} : vector<16x64xf32>, vector<64x32xf32>, vector<16x32xf32> -> vector<16x32xf32>
    %125 = vector.broadcast %8 : vector<1x32xf32> to vector<16x32xf32>
    %126 = arith.addf %124, %125 : vector<16x32xf32>
    %127 = arith.addf %126, %110 : vector<16x32xf32>
    %cst_44 = arith.constant dense<0.000000e+00> : vector<16xf32>
    %128 = vector.multi_reduction <add>, %127, %cst_44 [1] : vector<16x32xf32> to vector<16xf32>
    %129 = vector.shape_cast %128 : vector<16xf32> to vector<16x1xf32>
    %cst_45 = arith.constant 3.200000e+01 : f32
    %130 = vector.broadcast %cst_45 : f32 to vector<16x1xf32>
    %131 = arith.divf %129, %130 : vector<16x1xf32>
    %132 = vector.broadcast %131 : vector<16x1xf32> to vector<16x32xf32>
    %133 = arith.subf %127, %132 : vector<16x32xf32>
    %134 = arith.mulf %133, %133 : vector<16x32xf32>
    %cst_46 = arith.constant dense<0.000000e+00> : vector<16xf32>
    %135 = vector.multi_reduction <add>, %134, %cst_46 [1] : vector<16x32xf32> to vector<16xf32>
    %136 = vector.shape_cast %135 : vector<16xf32> to vector<16x1xf32>
    %cst_47 = arith.constant 3.200000e+01 : f32
    %137 = vector.broadcast %cst_47 : f32 to vector<16x1xf32>
    %138 = arith.divf %136, %137 : vector<16x1xf32>
    %139 = vector.broadcast %131 : vector<16x1xf32> to vector<16x32xf32>
    %140 = arith.subf %127, %139 : vector<16x32xf32>
    %cst_48 = arith.constant 9.99999996E-13 : f32
    %141 = vector.broadcast %cst_48 : f32 to vector<16x1xf32>
    %142 = arith.addf %138, %141 : vector<16x1xf32>
    %143 = math.sqrt %142 : vector<16x1xf32>
    %144 = vector.broadcast %143 : vector<16x1xf32> to vector<16x32xf32>
    %145 = arith.divf %140, %144 : vector<16x32xf32>
    %146 = vector.broadcast %9 : vector<1x32xf32> to vector<16x32xf32>
    %147 = arith.mulf %146, %145 : vector<16x32xf32>
    %148 = vector.broadcast %10 : vector<1x32xf32> to vector<16x32xf32>
    %149 = arith.addf %147, %148 : vector<16x32xf32>
    %c0_49 = arith.constant 0 : index
    %c0_50 = arith.constant 0 : index
    %150 = vector.load %arg8[%c0_49, %c0_50] : memref<16x32xf32, #tpu.memory_space<vmem>>, vector<16x32xf32>
    tpu.vector_store %arg8[%c0_49, %c0_50], %149 {strides = array<i32>} : memref<16x32xf32, #tpu.memory_space<vmem>>, vector<16x32xf32>,
    return
  }
  func.func @transform_0(%arg0: i32) -> (i32, i32) {
    %c0_i32 = arith.constant 0 : i32
    %c0_i32_0 = arith.constant 0 : i32
    %c0_i32_1 = arith.constant 0 : i32
    return %c0_i32, %c0_i32_0 : i32, i32
  }
  func.func @transform_1(%arg0: i32) -> (i32, i32) {
    %c0_i32 = arith.constant 0 : i32
    %c0_i32_0 = arith.constant 0 : i32
    %c0_i32_1 = arith.constant 0 : i32
    return %c0_i32, %c0_i32_0 : i32, i32
  }
  func.func @transform_2(%arg0: i32) -> (i32, i32) {
    %c0_i32 = arith.constant 0 : i32
    %c0_i32_0 = arith.constant 0 : i32
    %c0_i32_1 = arith.constant 0 : i32
    return %c0_i32, %c0_i32_0 : i32, i32
  }
  func.func @transform_3(%arg0: i32) -> (i32, i32) {
    %c0_i32 = arith.constant 0 : i32
    %c0_i32_0 = arith.constant 0 : i32
    %c0_i32_1 = arith.constant 0 : i32
    return %c0_i32, %c0_i32_0 : i32, i32
  }
  func.func @transform_4(%arg0: i32) -> (i32, i32) {
    %c0_i32 = arith.constant 0 : i32
    %c0_i32_0 = arith.constant 0 : i32
    %c0_i32_1 = arith.constant 0 : i32
    return %c0_i32, %c0_i32_0 : i32, i32
  }
  func.func @transform_5(%arg0: i32) -> (i32, i32) {
    %c0_i32 = arith.constant 0 : i32
    %c0_i32_0 = arith.constant 0 : i32
    %c0_i32_1 = arith.constant 0 : i32
    return %c0_i32, %c0_i32_0 : i32, i32
  }
  func.func @transform_6(%arg0: i32) -> (i32, i32) {
    %c0_i32 = arith.constant 0 : i32
    %c0_i32_0 = arith.constant 0 : i32
    %c0_i32_1 = arith.constant 0 : i32
    return %c0_i32, %c0_i32_0 : i32, i32
  }
  func.func @transform_7(%arg0: i32) -> (i32, i32) {
    %c0_i32 = arith.constant 0 : i32
    %c0_i32_0 = arith.constant 0 : i32
    %c0_i32_1 = arith.constant 0 : i32
    return %c0_i32, %c0_i32_0 : i32, i32
  }
}

</mosaic_0001>

<llo_original>
// kernel: tpu_custom_call.1
$region0: #{tpu_custom_call.1}
  #allocation0 [shape = 'u32[]', space=smem, size = 0x4, offset = 0x4, fixed_abs, tag = 'smem constant byte address 0x4 - core index']
  #allocation1 [shape = 'u32[144,128]{1,0:T(1,128)}', space=vmem, size = 0x12000, scoped, tag = 'internal scratch']
  %s0 = inlined_call_operand.hbm [shape: f32[16,32], index: 0, kind: input, shape index: {}]
  %s1 = inlined_call_operand.hbm [shape: f32[16,16], index: 1, kind: input, shape index: {}]
  %s2 = inlined_call_operand.vmem [shape: f32[32,96], index: 2, kind: input, shape index: {}]
  %s3 = inlined_call_operand.vmem [shape: f32[32,32], index: 3, kind: input, shape index: {}]
  %s4 = inlined_call_operand.vmem [shape: f32[32,64], index: 4, kind: input, shape index: {}]
  %s5 = inlined_call_operand.vmem [shape: f32[64,32], index: 5, kind: input, shape index: {}]
  %s6 = inlined_call_operand.vmem [shape: f32[8,128], index: 6, kind: input, shape index: {}]
  %s7 = inlined_call_operand.hbm [shape: f32[16,32], index: 7, kind: output, shape index: {}]
  %s8 = sld [smem:[#allocation0]]
  $region46: #{tpu_custom_call.1} parent=0
    _
  %s10 = ssub.s32 1, %s8
  %s11 = scalar_select 0, %s10, %s8
  $region1: #{tpu_custom_call.1} parent=0
    #allocation2 [shape = 'u8[8192]{0}', space=vmem, size = 0x2000, scoped, tag = 'input window, operand 0, single buffered']
    #allocation3 [shape = 's32[1]{0}', space=sflag, size = 0x4, scoped, tag = 'scoped memory for tpu_custom_call.1']
    #allocation4 [shape = 's32[1]{0}', space=sflag, size = 0x4, scoped, tag = 'scoped memory for tpu_custom_call.1']
    #allocation5 [shape = 'u8[8192]{0}', space=vmem, size = 0x2000, scoped, tag = 'input window, operand 1, single buffered']
    #allocation6 [shape = 's32[1]{0}', space=sflag, size = 0x4, scoped, tag = 'scoped memory for tpu_custom_call.1']
    #allocation7 [shape = 'u8[8192]{0}', space=vmem, size = 0x2000, scoped, tag = 'output window, operand 0, single buffered']
    %12 = vsyncpa [#allocation3], 0
    %13 = vsyncpa [#allocation6], 0
    %14 = vsyncpa [#allocation4], 0
    // Predicated region
    $region2: #{tpu_custom_call.1} parent=1 // pred_check
      _
    $region3: #{tpu_custom_call.1} parent=1 // pred_check_branch
      %16 = sbr.rel (0) target = $region5
    $region4: #{tpu_custom_call.1} parent=1 // pred_region
      %s18 = ssub.s32 256, 256
      %19 = vsyncadd [#allocation3], %s18
      %s20 = sshll.u32 [#allocation2], 4
      %s21 = int_to_ptr.vmem [resolvable:$true] %s20
      %26 = dma.hbm_to_vmem [thread:$0]  %s0, 256, %s21, [#allocation3], 128, 128, 8
    $region5: #{tpu_custom_call.1} parent=1 // pred_fallthru
      _
    // Predicated region
    $region6: #{tpu_custom_call.1} parent=1 // pred_check
      _
    $region7: #{tpu_custom_call.1} parent=1 // pred_check_branch
      %28 = sbr.rel (0) target = $region9
    $region8: #{tpu_custom_call.1} parent=1 // pred_region
      %s30 = ssub.s32 256, 256
      %31 = vsyncadd [#allocation6], %s30
      %s32 = sshll.u32 [#allocation5], 4
      %s33 = int_to_ptr.vmem [resolvable:$true] %s32
      %38 = dma.hbm_to_vmem [thread:$0]  %s1, 256, %s33, [#allocation6], 128, 128, 8
    $region9: #{tpu_custom_call.1} parent=1 // pred_fallthru
      _
    // Predicated region
    $region10: #{tpu_custom_call.1} parent=1 // pred_check
      _
    $region11: #{tpu_custom_call.1} parent=1 // pred_check_branch
      %40 = sbr.rel (0) target = $region13
    $region12: #{tpu_custom_call.1} parent=1 // pred_region
      _
    $region13: #{tpu_custom_call.1} parent=1 // pred_fallthru
      _
    // Predicated region
    $region14: #{tpu_custom_call.1} parent=1 // pred_check
      _
    $region15: #{tpu_custom_call.1} parent=1 // pred_check_branch
      %42 = sbr.rel (0) target = $region17
    $region16: #{tpu_custom_call.1} parent=1 // pred_region
      _
    $region17: #{tpu_custom_call.1} parent=1 // pred_fallthru
      _
    // Predicated region
    $region18: #{tpu_custom_call.1} parent=1 // pred_check
      _
    $region19: #{tpu_custom_call.1} parent=1 // pred_check_branch
      %44 = sbr.rel (0) target = $region21
    $region20: #{tpu_custom_call.1} parent=1 // pred_region
      _
    $region21: #{tpu_custom_call.1} parent=1 // pred_fallthru
      _
    // Predicated region
    $region22: #{tpu_custom_call.1} parent=1 // pred_check
      _
    $region23: #{tpu_custom_call.1} parent=1 // pred_check_branch
      %46 = sbr.rel (0) target = $region25
    $region24: #{tpu_custom_call.1} parent=1 // pred_region
      _
    $region25: #{tpu_custom_call.1} parent=1 // pred_fallthru
      _
    // Predicated region
    $region26: #{tpu_custom_call.1} parent=1 // pred_check
      _
    $region27: #{tpu_custom_call.1} parent=1 // pred_check_branch
      %48 = sbr.rel (0) target = $region29
    $region28: #{tpu_custom_call.1} parent=1 // pred_region
      _
    $region29: #{tpu_custom_call.1} parent=1 // pred_fallthru
      _
    // Predicated region
    $region30: #{tpu_custom_call.1} parent=1 // pred_check
      _
    $region31: #{tpu_custom_call.1} parent=1 // pred_check_branch
      %50 = sbr.rel (0) target = $region33
    $region32: #{tpu_custom_call.1} parent=1 // pred_region
      %51 = dma.done [#allocation3], 256
    $region33: #{tpu_custom_call.1} parent=1 // pred_fallthru
      _
    // Predicated region
    $region34: #{tpu_custom_call.1} parent=1 // pred_check
      _
    $region35: #{tpu_custom_call.1} parent=1 // pred_check_branch
      %53 = sbr.rel (0) target = $region37
    $region36: #{tpu_custom_call.1} parent=1 // pred_region
      %54 = dma.done [#allocation6], 256
    $region37: #{tpu_custom_call.1} parent=1 // pred_fallthru
      _
    %v55 = vld [vmem:[#allocation2] sm:$0xff]
    %v56 = vld [vmem:[#allocation2 + $0x8] sm:$0xff]
    %v57 = vld [vmem:[#allocation5] sm:$0xff]
    %v58 = vld [vmem:[#allocation5 + $0x8] sm:$0xff]
    %v59 = vld [vmem:[%s6] sm:$0xff]
    %v60 = vld [vmem:[%s2] sm:$0xff]
    %v61 = vld [vmem:[%s2 + $0x8] sm:$0xff]
    %v62 = vld [vmem:[%s2 + $0x10] sm:$0xff]
    %v63 = vld [vmem:[%s2 + $0x18] sm:$0xff]
    %v64 = vlaneseq
    %v65 = vshrl.u32 %v64, 7
    %v66 = vsub.s32 0, %v65
    %v67 = vrot.slane %v59, %v66
    %vm68 = vcmask 261120
    %v70 = vsel %vm68, %v55, 0
    %v73 = vsel %vm68, %v56, 0
    %75 = vmatprep.subr.mxu0 0.0
    %76 = vmatpush1.msra.mxu0 %v60
    %77 = vmatprep.subr.mxu0 0.0
    %78 = vmatpush1.msra.mxu0 %v61
    %79 = vmatprep.subr.mxu0 0.0
    %80 = vmatpush1.msra.mxu0 %v62
    %81 = vmatprep.subr.mxu0 0.0
    %82 = vmatpush1.msra.mxu0 %v63
    %83 = vmatprep.subr.mxu0 0.0
    %84 = vmatpush1.msra.mxu0 0.0
    %85 = vmatprep.subr.mxu0 0.0
    %86 = vmatpush1.msra.mxu0 0.0
    %87 = vmatprep.subr.mxu0 0.0
    %88 = vmatpush1.msra.mxu0 0.0
    %89 = vmatprep.subr.mxu0 0.0
    %90 = vmatpush1.msra.mxu0 0.0
    %91 = vmatprep.subr.mxu0 0.0
    %92 = vmatpush1.msra.mxu0 0.0
    %93 = vmatprep.subr.mxu0 0.0
    %94 = vmatpush1.msra.mxu0 0.0
    %95 = vmatprep.subr.mxu0 0.0
    %96 = vmatpush1.msra.mxu0 0.0
    %97 = vmatprep.subr.mxu0 0.0
    %98 = vmatpush1.msra.mxu0 0.0
    %99 = vmatprep.subr.mxu0 0.0
    %100 = vmatpush1.msra.mxu0 0.0
    %101 = vmatprep.subr.mxu0 0.0
    %102 = vmatpush1.msra.mxu0 0.0
    %103 = vmatprep.subr.mxu0 0.0
    %104 = vmatpush1.msra.mxu0 0.0
    %105 = vmatprep.subr.mxu0 0.0
    %106 = vmatpush1.msra.mxu0 0.0
    %107 = vmatprep.subr.mxu0 0.0
    %108 = vmatpush1.msra.mxu0 0.0
    %109 = vmatprep.subr.mxu0 0.0
    %110 = vmatpush1.msra.mxu0 0.0
    %111 = vmatprep.subr.mxu0 0.0
    %112 = vmatpush1.msra.mxu0 0.0
    %113 = vmatprep.subr.mxu0 0.0
    %114 = vmatpush1.msra.mxu0 0.0
    %115 = vmatprep.subr.mxu0 0.0
    %116 = vmatpush1.msra.mxu0 0.0
    %117 = vmatprep.subr.mxu0 0.0
    %118 = vmatpush1.msra.mxu0 0.0
    %119 = vmatprep.subr.mxu0 0.0
    %120 = vmatpush1.msra.mxu0 0.0
    %121 = vmatprep.subr.mxu0 0.0
    %122 = vmatpush1.msra.mxu0 0.0
    %123 = vmatprep.subr.mxu0 0.0
    %124 = vmatpush1.msra.mxu0 0.0
    %125 = vmatprep.subr.mxu0 0.0
    %126 = vmatpush1.msra.mxu0 0.0
    %127 = vmatprep.subr.mxu0 0.0
    %128 = vmatpush1.msra.mxu0 0.0
    %129 = vmatprep.subr.mxu0 0.0
    %130 = vmatpush1.msra.mxu0 0.0
    %131 = vmatprep.subr.mxu0 0.0
    %132 = vmatpush1.msra.mxu0 0.0
    %133 = vmatprep.subr.mxu0 0.0
    %134 = vmatpush1.msra.mxu0 0.0
    %135 = vmatprep.subr.mxu0 0.0
    %136 = vmatpush1.msra.mxu0 0.0
    %137 = vmatprep.subr.mxu0 0.0
    %138 = vmatpush1.msra.mxu0 0.0
    %139 = vmatprep.mubr.f32.mxu0 0.0
    %140 = vmatmul.mubr.f32.gmra.mrb[0].mxu0 %v70
    %v141 = vpop.f32.mrb[0].mxu0
    %v142 = vadd.f32 %v67, %v141
    %v143 = vpop.f32.mrb[0].mxu0
    %144 = vmatprep.mubr.f32.mxu0 0.0
    %145 = vmatmul.mubr.f32.gmra.mrb[0].mxu0 %v73
    %v146 = vpop.f32.mrb[0].mxu0
    %v147 = vadd.f32 %v67, %v146
    %v148 = vpop.f32.mrb[0].mxu0
    %149 = vdwg.mxu0
    %152 = vrot.lane.b32.xlu0 %v142, 96
    %v153 = vpop.permute.xlu0 %152
    %154 = vrot.lane.b32.xlu0 %v147, 96
    %v155 = vpop.permute.xlu0 %154
    %vm156 = vcmask 64512
    %v157 = vsel %vm156, %v142, 0
    %v159 = vsel %vm156, %v147, 0
    %v161 = vsel %vm156, %v153, 0
    %v163 = vsel %vm156, %v155, 0
    %165 = vmatprep.subr.mxu0 0.0
    %166 = vmatpush1.xpose.msra.mxu0 %v161
    %167 = vmatprep.subr.mxu0 0.0
    %168 = vmatpush1.xpose.msra.mxu0 %v163
    %169 = vmatprep.subr.mxu0 0.0
    %170 = vmatpush1.xpose.msra.mxu0 0.0
    %171 = vmatprep.subr.mxu0 0.0
    %172 = vmatpush1.xpose.msra.mxu0 0.0
    %173 = vmatprep.subr.mxu0 0.0
    %174 = vmatpush1.xpose.msra.mxu0 0.0
    %175 = vmatprep.subr.mxu0 0.0
    %176 = vmatpush1.xpose.msra.mxu0 0.0
    %177 = vmatprep.subr.mxu0 0.0
    %178 = vmatpush1.xpose.msra.mxu0 0.0
    %179 = vmatprep.subr.mxu0 0.0
    %180 = vmatpush1.xpose.msra.mxu0 0.0
    %181 = vmatprep.subr.mxu0 0.0
    %182 = vmatpush1.xpose.msra.mxu0 0.0
    %183 = vmatprep.subr.mxu0 0.0
    %184 = vmatpush1.xpose.msra.mxu0 0.0
    %185 = vmatprep.subr.mxu0 0.0
    %186 = vmatpush1.xpose.msra.mxu0 0.0
    %187 = vmatprep.subr.mxu0 0.0
    %188 = vmatpush1.xpose.msra.mxu0 0.0
    %189 = vmatprep.subr.mxu0 0.0
    %190 = vmatpush1.xpose.msra.mxu0 0.0
    %191 = vmatprep.subr.mxu0 0.0
    %192 = vmatpush1.xpose.msra.mxu0 0.0
    %193 = vmatprep.subr.mxu0 0.0
    %194 = vmatpush1.xpose.msra.mxu0 0.0
    %195 = vmatprep.subr.mxu0 0.0
    %196 = vmatpush1.xpose.msra.mxu0 0.0
    %197 = vmatprep.subr.mxu0 0.0
    %198 = vmatpush1.xpose.msra.mxu0 0.0
    %199 = vmatprep.subr.mxu0 0.0
    %200 = vmatpush1.xpose.msra.mxu0 0.0
    %201 = vmatprep.subr.mxu0 0.0
    %202 = vmatpush1.xpose.msra.mxu0 0.0
    %203 = vmatprep.subr.mxu0 0.0
    %204 = vmatpush1.xpose.msra.mxu0 0.0
    %205 = vmatprep.subr.mxu0 0.0
    %206 = vmatpush1.xpose.msra.mxu0 0.0
    %207 = vmatprep.subr.mxu0 0.0
    %208 = vmatpush1.xpose.msra.mxu0 0.0
    %209 = vmatprep.subr.mxu0 0.0
    %210 = vmatpush1.xpose.msra.mxu0 0.0
    %211 = vmatprep.subr.mxu0 0.0
    %212 = vmatpush1.xpose.msra.mxu0 0.0
    %213 = vmatprep.subr.mxu0 0.0
    %214 = vmatpush1.xpose.msra.mxu0 0.0
    %215 = vmatprep.subr.mxu0 0.0
    %216 = vmatpush1.xpose.msra.mxu0 0.0
    %217 = vmatprep.subr.mxu0 0.0
    %218 = vmatpush1.xpose.msra.mxu0 0.0
    %219 = vmatprep.subr.mxu0 0.0
    %220 = vmatpush1.xpose.msra.mxu0 0.0
    %221 = vmatprep.subr.mxu0 0.0
    %222 = vmatpush1.xpose.msra.mxu0 0.0
    %223 = vmatprep.subr.mxu0 0.0
    %224 = vmatpush1.xpose.msra.mxu0 0.0
    %225 = vmatprep.subr.mxu0 0.0
    %226 = vmatpush1.xpose.msra.mxu0 0.0
    %227 = vmatprep.subr.mxu0 0.0
    %228 = vmatpush1.xpose.msra.mxu0 0.0
    %229 = vmatprep.mubr.f32.mxu0 0.0
    %230 = vmatmul.mubr.f32.gmra.mrb[0].mxu0 %v157
    %v231 = vpop.f32.mrb[0].mxu0
    %v232 = vadd.f32 0.0, %v231
    %v233 = vpop.f32.mrb[0].mxu0
    %234 = vmatprep.mubr.f32.mxu0 0.0
    %235 = vmatmul.mubr.f32.gmra.mrb[0].mxu0 %v159
    %v236 = vpop.f32.mrb[0].mxu0
    %v237 = vadd.f32 0.0, %v236
    %v238 = vpop.f32.mrb[0].mxu0
    %239 = vdwg.mxu0
    %v240 = vmul.f32 %v232, 0.35355338
    %v241 = vmul.f32 %v237, 0.35355338
    %v242 = vadd.f32 %v240, %v57
    %v243 = vadd.f32 %v241, %v58
    %vm244 = vcmask 130048
    %v245 = vsel %vm244, %v242, -inf
    %246 = vmax.xlane.f32.xlu0 %v245
    %v247 = vpop.xlane.xlu0 %246
    %v248 = vsel %vm244, %v243, -inf
    %249 = vmax.xlane.f32.xlu0 %v248
    %v250 = vpop.xlane.xlu0 %249
    %v251 = vsub.f32 %v242, %v247
    %v252 = vsub.f32 %v243, %v250
    %v253 = vmul.f32 %v251, 1.442695
    %v254 = vpow.pop %v253
    %v255 = vmul.f32 %v252, 1.442695
    %v256 = vpow.pop %v255
    %v257 = vsel %vm244, %v254, 0.0
    %258 = vadd.xlane.f32.xlu0 %v257
    %v259 = vpop.xlane.xlu0 %258
    %v260 = vsel %vm244, %v256, 0.0
    %261 = vadd.xlane.f32.xlu0 %v260
    %v262 = vpop.xlane.xlu0 %261
    %v263 = vrcp.pop %v259
    %v264 = vmul.f32 %v254, %v263
    %v265 = vrcp.pop %v262
    %v266 = vmul.f32 %v256, %v265
    %267 = vrot.lane.b32.xlu0 %v142, 64
    %v268 = vpop.permute.xlu0 %267
    %269 = vrot.lane.b32.xlu0 %v147, 64
    %v270 = vpop.permute.xlu0 %269
    %v274 = vsel %vm244, %v264, 0
    %v277 = vsel %vm244, %v266, 0
    %279 = vmatprep.subr.mxu0 0.0
    %280 = vmatpush1.msra.mxu0 %v268
    %281 = vmatprep.subr.mxu0 0.0
    %282 = vmatpush1.msra.mxu0 %v270
    %283 = vmatprep.subr.mxu0 0.0
    %284 = vmatpush1.msra.mxu0 0.0
    %285 = vmatprep.subr.mxu0 0.0
    %286 = vmatpush1.msra.mxu0 0.0
    %287 = vmatprep.subr.mxu0 0.0
    %288 = vmatpush1.msra.mxu0 0.0
    %289 = vmatprep.subr.mxu0 0.0
    %290 = vmatpush1.msra.mxu0 0.0
    %291 = vmatprep.subr.mxu0 0.0
    %292 = vmatpush1.msra.mxu0 0.0
    %293 = vmatprep.subr.mxu0 0.0
    %294 = vmatpush1.msra.mxu0 0.0
    %295 = vmatprep.subr.mxu0 0.0
    %296 = vmatpush1.msra.mxu0 0.0
    %297 = vmatprep.subr.mxu0 0.0
    %298 = vmatpush1.msra.mxu0 0.0
    %299 = vmatprep.subr.mxu0 0.0
    %300 = vmatpush1.msra.mxu0 0.0
    %301 = vmatprep.subr.mxu0 0.0
    %302 = vmatpush1.msra.mxu0 0.0
    %303 = vmatprep.subr.mxu0 0.0
    %304 = vmatpush1.msra.mxu0 0.0
    %305 = vmatprep.subr.mxu0 0.0
    %306 = vmatpush1.msra.mxu0 0.0
    %307 = vmatprep.subr.mxu0 0.0
    %308 = vmatpush1.msra.mxu0 0.0
    %309 = vmatprep.subr.mxu0 0.0
    %310 = vmatpush1.msra.mxu0 0.0
    %311 = vmatprep.subr.mxu0 0.0
    %312 = vmatpush1.msra.mxu0 0.0
    %313 = vmatprep.subr.mxu0 0.0
    %314 = vmatpush1.msra.mxu0 0.0
    %315 = vmatprep.subr.mxu0 0.0
    %316 = vmatpush1.msra.mxu0 0.0
    %317 = vmatprep.subr.mxu0 0.0
    %318 = vmatpush1.msra.mxu0 0.0
    %319 = vmatprep.subr.mxu0 0.0
    %320 = vmatpush1.msra.mxu0 0.0
    %321 = vmatprep.subr.mxu0 0.0
    %322 = vmatpush1.msra.mxu0 0.0
    %323 = vmatprep.subr.mxu0 0.0
    %324 = vmatpush1.msra.mxu0 0.0
    %325 = vmatprep.subr.mxu0 0.0
    %326 = vmatpush1.msra.mxu0 0.0
    %327 = vmatprep.subr.mxu0 0.0
    %328 = vmatpush1.msra.mxu0 0.0
    %329 = vmatprep.subr.mxu0 0.0
    %330 = vmatpush1.msra.mxu0 0.0
    %331 = vmatprep.subr.mxu0 0.0
    %332 = vmatpush1.msra.mxu0 0.0
    %333 = vmatprep.subr.mxu0 0.0
    %334 = vmatpush1.msra.mxu0 0.0
    %335 = vmatprep.subr.mxu0 0.0
    %336 = vmatpush1.msra.mxu0 0.0
    %337 = vmatprep.subr.mxu0 0.0
    %338 = vmatpush1.msra.mxu0 0.0
    %339 = vmatprep.subr.mxu0 0.0
    %340 = vmatpush1.msra.mxu0 0.0
    %341 = vmatprep.subr.mxu0 0.0
    %342 = vmatpush1.msra.mxu0 0.0
    %343 = vmatprep.mubr.f32.mxu0 0.0
    %344 = vmatmul.mubr.f32.gmra.mrb[0].mxu0 %v274
    %v345 = vpop.f32.mrb[0].mxu0
    %v346 = vadd.f32 0.0, %v345
    %v347 = vpop.f32.mrb[0].mxu0
    %348 = vmatprep.mubr.f32.mxu0 0.0
    %349 = vmatmul.mubr.f32.gmra.mrb[0].mxu0 %v277
    %v350 = vpop.f32.mrb[0].mxu0
    %v351 = vadd.f32 0.0, %v350
    %v352 = vpop.f32.mrb[0].mxu0
    %353 = vdwg.mxu0
    %354 = vrot.lane.b32.xlu0 %v142, 120
    %v355 = vpop.permute.xlu0 %354
    %356 = vrot.lane.b32.xlu0 %v147, 120
    %v357 = vpop.permute.xlu0 %356
    %358 = vrot.lane.b32.xlu0 %v142, 88
    %v359 = vpop.permute.xlu0 %358
    %360 = vrot.lane.b32.xlu0 %v147, 88
    %v361 = vpop.permute.xlu0 %360
    %v362 = vsel %vm156, %v355, 0
    %v364 = vsel %vm156, %v357, 0
    %v366 = vsel %vm156, %v359, 0
    %v368 = vsel %vm156, %v361, 0
    %370 = vmatprep.subr.mxu0 0.0
    %371 = vmatpush1.xpose.msra.mxu0 %v366
    %372 = vmatprep.subr.mxu0 0.0
    %373 = vmatpush1.xpose.msra.mxu0 %v368
    %374 = vmatprep.subr.mxu0 0.0
    %375 = vmatpush1.xpose.msra.mxu0 0.0
    %376 = vmatprep.subr.mxu0 0.0
    %377 = vmatpush1.xpose.msra.mxu0 0.0
    %378 = vmatprep.subr.mxu0 0.0
    %379 = vmatpush1.xpose.msra.mxu0 0.0
    %380 = vmatprep.subr.mxu0 0.0
    %381 = vmatpush1.xpose.msra.mxu0 0.0
    %382 = vmatprep.subr.mxu0 0.0
    %383 = vmatpush1.xpose.msra.mxu0 0.0
    %384 = vmatprep.subr.mxu0 0.0
    %385 = vmatpush1.xpose.msra.mxu0 0.0
    %386 = vmatprep.subr.mxu0 0.0
    %387 = vmatpush1.xpose.msra.mxu0 0.0
    %388 = vmatprep.subr.mxu0 0.0
    %389 = vmatpush1.xpose.msra.mxu0 0.0
    %390 = vmatprep.subr.mxu0 0.0
    %391 = vmatpush1.xpose.msra.mxu0 0.0
    %392 = vmatprep.subr.mxu0 0.0
    %393 = vmatpush1.xpose.msra.mxu0 0.0
    %394 = vmatprep.subr.mxu0 0.0
    %395 = vmatpush1.xpose.msra.mxu0 0.0
    %396 = vmatprep.subr.mxu0 0.0
    %397 = vmatpush1.xpose.msra.mxu0 0.0
    %398 = vmatprep.subr.mxu0 0.0
    %399 = vmatpush1.xpose.msra.mxu0 0.0
    %400 = vmatprep.subr.mxu0 0.0
    %401 = vmatpush1.xpose.msra.mxu0 0.0
    %402 = vmatprep.subr.mxu0 0.0
    %403 = vmatpush1.xpose.msra.mxu0 0.0
    %404 = vmatprep.subr.mxu0 0.0
    %405 = vmatpush1.xpose.msra.mxu0 0.0
    %406 = vmatprep.subr.mxu0 0.0
    %407 = vmatpush1.xpose.msra.mxu0 0.0
    %408 = vmatprep.subr.mxu0 0.0
    %409 = vmatpush1.xpose.msra.mxu0 0.0
    %410 = vmatprep.subr.mxu0 0.0
    %411 = vmatpush1.xpose.msra.mxu0 0.0
    %412 = vmatprep.subr.mxu0 0.0
    %413 = vmatpush1.xpose.msra.mxu0 0.0
    %414 = vmatprep.subr.mxu0 0.0
    %415 = vmatpush1.xpose.msra.mxu0 0.0
    %416 = vmatprep.subr.mxu0 0.0
    %417 = vmatpush1.xpose.msra.mxu0 0.0
    %418 = vmatprep.subr.mxu0 0.0
    %419 = vmatpush1.xpose.msra.mxu0 0.0
    %420 = vmatprep.subr.mxu0 0.0
    %421 = vmatpush1.xpose.msra.mxu0 0.0
    %422 = vmatprep.subr.mxu0 0.0
    %423 = vmatpush1.xpose.msra.mxu0 0.0
    %424 = vmatprep.subr.mxu0 0.0
    %425 = vmatpush1.xpose.msra.mxu0 0.0
    %426 = vmatprep.subr.mxu0 0.0
    %427 = vmatpush1.xpose.msra.mxu0 0.0
    %428 = vmatprep.subr.mxu0 0.0
    %429 = vmatpush1.xpose.msra.mxu0 0.0
    %430 = vmatprep.subr.mxu0 0.0
    %431 = vmatpush1.xpose.msra.mxu0 0.0
    %432 = vmatprep.subr.mxu0 0.0
    %433 = vmatpush1.xpose.msra.mxu0 0.0
    %434 = vmatprep.mubr.f32.mxu0 0.0
    %435 = vmatmul.mubr.f32.gmra.mrb[0].mxu0 %v362
    %v436 = vpop.f32.mrb[0].mxu0
    %v437 = vadd.f32 0.0, %v436
    %v438 = vpop.f32.mrb[0].mxu0
    %439 = vmatprep.mubr.f32.mxu0 0.0
    %440 = vmatmul.mubr.f32.gmra.mrb[0].mxu0 %v364
    %v441 = vpop.f32.mrb[0].mxu0
    %v442 = vadd.f32 0.0, %v441
    %v443 = vpop.f32.mrb[0].mxu0
    %444 = vdwg.mxu0
    %v445 = vmul.f32 %v437, 0.35355338
    %v446 = vmul.f32 %v442, 0.35355338
    %v447 = vadd.f32 %v445, %v57
    %v448 = vadd.f32 %v446, %v58
    %v449 = vsel %vm244, %v447, -inf
    %450 = vmax.xlane.f32.xlu0 %v449
    %v451 = vpop.xlane.xlu0 %450
    %v452 = vsel %vm244, %v448, -inf
    %453 = vmax.xlane.f32.xlu0 %v452
    %v454 = vpop.xlane.xlu0 %453
    %v455 = vsub.f32 %v447, %v451
    %v456 = vsub.f32 %v448, %v454
    %v457 = vmul.f32 %v455, 1.442695
    %v458 = vpow.pop %v457
    %v459 = vmul.f32 %v456, 1.442695
    %v460 = vpow.pop %v459
    %v461 = vsel %vm244, %v458, 0.0
    %462 = vadd.xlane.f32.xlu0 %v461
    %v463 = vpop.xlane.xlu0 %462
    %v464 = vsel %vm244, %v460, 0.0
    %465 = vadd.xlane.f32.xlu0 %v464
    %v466 = vpop.xlane.xlu0 %465
    %v467 = vrcp.pop %v463
    %v468 = vmul.f32 %v458, %v467
    %v469 = vrcp.pop %v466
    %v470 = vmul.f32 %v460, %v469
    %471 = vrot.lane.b32.xlu0 %v142, 56
    %v472 = vpop.permute.xlu0 %471
    %473 = vrot.lane.b32.xlu0 %v147, 56
    %v474 = vpop.permute.xlu0 %473
    %v478 = vsel %vm244, %v468, 0
    %v481 = vsel %vm244, %v470, 0
    %483 = vmatprep.subr.mxu0 0.0
    %484 = vmatpush1.msra.mxu0 %v472
    %485 = vmatprep.subr.mxu0 0.0
    %486 = vmatpush1.msra.mxu0 %v474
    %487 = vmatprep.subr.mxu0 0.0
    %488 = vmatpush1.msra.mxu0 0.0
    %489 = vmatprep.subr.mxu0 0.0
    %490 = vmatpush1.msra.mxu0 0.0
    %491 = vmatprep.subr.mxu0 0.0
    %492 = vmatpush1.msra.mxu0 0.0
    %493 = vmatprep.subr.mxu0 0.0
    %494 = vmatpush1.msra.mxu0 0.0
    %495 = vmatprep.subr.mxu0 0.0
    %496 = vmatpush1.msra.mxu0 0.0
    %497 = vmatprep.subr.mxu0 0.0
    %498 = vmatpush1.msra.mxu0 0.0
    %499 = vmatprep.subr.mxu0 0.0
    %500 = vmatpush1.msra.mxu0 0.0
    %501 = vmatprep.subr.mxu0 0.0
    %502 = vmatpush1.msra.mxu0 0.0
    %503 = vmatprep.subr.mxu0 0.0
    %504 = vmatpush1.msra.mxu0 0.0
    %505 = vmatprep.subr.mxu0 0.0
    %506 = vmatpush1.msra.mxu0 0.0
    %507 = vmatprep.subr.mxu0 0.0
    %508 = vmatpush1.msra.mxu0 0.0
    %509 = vmatprep.subr.mxu0 0.0
    %510 = vmatpush1.msra.mxu0 0.0
    %511 = vmatprep.subr.mxu0 0.0
    %512 = vmatpush1.msra.mxu0 0.0
    %513 = vmatprep.subr.mxu0 0.0
    %514 = vmatpush1.msra.mxu0 0.0
    %515 = vmatprep.subr.mxu0 0.0
    %516 = vmatpush1.msra.mxu0 0.0
    %517 = vmatprep.subr.mxu0 0.0
    %518 = vmatpush1.msra.mxu0 0.0
    %519 = vmatprep.subr.mxu0 0.0
    %520 = vmatpush1.msra.mxu0 0.0
    %521 = vmatprep.subr.mxu0 0.0
    %522 = vmatpush1.msra.mxu0 0.0
    %523 = vmatprep.subr.mxu0 0.0
    %524 = vmatpush1.msra.mxu0 0.0
    %525 = vmatprep.subr.mxu0 0.0
    %526 = vmatpush1.msra.mxu0 0.0
    %527 = vmatprep.subr.mxu0 0.0
    %528 = vmatpush1.msra.mxu0 0.0
    %529 = vmatprep.subr.mxu0 0.0
    %530 = vmatpush1.msra.mxu0 0.0
    %531 = vmatprep.subr.mxu0 0.0
    %532 = vmatpush1.msra.mxu0 0.0
    %533 = vmatprep.subr.mxu0 0.0
    %534 = vmatpush1.msra.mxu0 0.0
    %535 = vmatprep.subr.mxu0 0.0
    %536 = vmatpush1.msra.mxu0 0.0
    %537 = vmatprep.subr.mxu0 0.0
    %538 = vmatpush1.msra.mxu0 0.0
    %539 = vmatprep.subr.mxu0 0.0
    %540 = vmatpush1.msra.mxu0 0.0
    %541 = vmatprep.subr.mxu0 0.0
    %542 = vmatpush1.msra.mxu0 0.0
    %543 = vmatprep.subr.mxu0 0.0
    %544 = vmatpush1.msra.mxu0 0.0
    %545 = vmatprep.subr.mxu0 0.0
    %546 = vmatpush1.msra.mxu0 0.0
    %547 = vmatprep.mubr.f32.mxu0 0.0
    %548 = vmatmul.mubr.f32.gmra.mrb[0].mxu0 %v478
    %v549 = vpop.f32.mrb[0].mxu0
    %v550 = vadd.f32 0.0, %v549
    %v551 = vpop.f32.mrb[0].mxu0
    %552 = vmatprep.mubr.f32.mxu0 0.0
    %553 = vmatmul.mubr.f32.gmra.mrb[0].mxu0 %v481
    %v554 = vpop.f32.mrb[0].mxu0
    %v555 = vadd.f32 0.0, %v554
    %v556 = vpop.f32.mrb[0].mxu0
    %557 = vdwg.mxu0
    %558 = vrot.lane.b32.xlu0 %v142, 112
    %v559 = vpop.permute.xlu0 %558
    %560 = vrot.lane.b32.xlu0 %v147, 112
    %v561 = vpop.permute.xlu0 %560
    %562 = vrot.lane.b32.xlu0 %v142, 80
    %v563 = vpop.permute.xlu0 %562
    %564 = vrot.lane.b32.xlu0 %v147, 80
    %v565 = vpop.permute.xlu0 %564
    %v566 = vsel %vm156, %v559, 0
    %v568 = vsel %vm156, %v561, 0
    %v570 = vsel %vm156, %v563, 0
    %v572 = vsel %vm156, %v565, 0
    %574 = vmatprep.subr.mxu0 0.0
    %575 = vmatpush1.xpose.msra.mxu0 %v570
    %576 = vmatprep.subr.mxu0 0.0
    %577 = vmatpush1.xpose.msra.mxu0 %v572
    %578 = vmatprep.subr.mxu0 0.0
    %579 = vmatpush1.xpose.msra.mxu0 0.0
    %580 = vmatprep.subr.mxu0 0.0
    %581 = vmatpush1.xpose.msra.mxu0 0.0
    %582 = vmatprep.subr.mxu0 0.0
    %583 = vmatpush1.xpose.msra.mxu0 0.0
    %584 = vmatprep.subr.mxu0 0.0
    %585 = vmatpush1.xpose.msra.mxu0 0.0
    %586 = vmatprep.subr.mxu0 0.0
    %587 = vmatpush1.xpose.msra.mxu0 0.0
    %588 = vmatprep.subr.mxu0 0.0
    %589 = vmatpush1.xpose.msra.mxu0 0.0
    %590 = vmatprep.subr.mxu0 0.0
    %591 = vmatpush1.xpose.msra.mxu0 0.0
    %592 = vmatprep.subr.mxu0 0.0
    %593 = vmatpush1.xpose.msra.mxu0 0.0
    %594 = vmatprep.subr.mxu0 0.0
    %595 = vmatpush1.xpose.msra.mxu0 0.0
    %596 = vmatprep.subr.mxu0 0.0
    %597 = vmatpush1.xpose.msra.mxu0 0.0
    %598 = vmatprep.subr.mxu0 0.0
    %599 = vmatpush1.xpose.msra.mxu0 0.0
    %600 = vmatprep.subr.mxu0 0.0
    %601 = vmatpush1.xpose.msra.mxu0 0.0
    %602 = vmatprep.subr.mxu0 0.0
    %603 = vmatpush1.xpose.msra.mxu0 0.0
    %604 = vmatprep.subr.mxu0 0.0
    %605 = vmatpush1.xpose.msra.mxu0 0.0
    %606 = vmatprep.subr.mxu0 0.0
    %607 = vmatpush1.xpose.msra.mxu0 0.0
    %608 = vmatprep.subr.mxu0 0.0
    %609 = vmatpush1.xpose.msra.mxu0 0.0
    %610 = vmatprep.subr.mxu0 0.0
    %611 = vmatpush1.xpose.msra.mxu0 0.0
    %612 = vmatprep.subr.mxu0 0.0
    %613 = vmatpush1.xpose.msra.mxu0 0.0
    %614 = vmatprep.subr.mxu0 0.0
    %615 = vmatpush1.xpose.msra.mxu0 0.0
    %616 = vmatprep.subr.mxu0 0.0
    %617 = vmatpush1.xpose.msra.mxu0 0.0
    %618 = vmatprep.subr.mxu0 0.0
    %619 = vmatpush1.xpose.msra.mxu0 0.0
    %620 = vmatprep.subr.mxu0 0.0
    %621 = vmatpush1.xpose.msra.mxu0 0.0
    %622 = vmatprep.subr.mxu0 0.0
    %623 = vmatpush1.xpose.msra.mxu0 0.0
    %624 = vmatprep.subr.mxu0 0.0
    %625 = vmatpush1.xpose.msra.mxu0 0.0
    %626 = vmatprep.subr.mxu0 0.0
    %627 = vmatpush1.xpose.msra.mxu0 0.0
    %628 = vmatprep.subr.mxu0 0.0
    %629 = vmatpush1.xpose.msra.mxu0 0.0
    %630 = vmatprep.subr.mxu0 0.0
    %631 = vmatpush1.xpose.msra.mxu0 0.0
    %632 = vmatprep.subr.mxu0 0.0
    %633 = vmatpush1.xpose.msra.mxu0 0.0
    %634 = vmatprep.subr.mxu0 0.0
    %635 = vmatpush1.xpose.msra.mxu0 0.0
    %636 = vmatprep.subr.mxu0 0.0
    %637 = vmatpush1.xpose.msra.mxu0 0.0
    %638 = vmatprep.mubr.f32.mxu0 0.0
    %639 = vmatmul.mubr.f32.gmra.mrb[0].mxu0 %v566
    %v640 = vpop.f32.mrb[0].mxu0
    %v641 = vadd.f32 0.0, %v640
    %v642 = vpop.f32.mrb[0].mxu0
    %643 = vmatprep.mubr.f32.mxu0 0.0
    %644 = vmatmul.mubr.f32.gmra.mrb[0].mxu0 %v568
    %v645 = vpop.f32.mrb[0].mxu0
    %v646 = vadd.f32 0.0, %v645
    %v647 = vpop.f32.mrb[0].mxu0
    %648 = vdwg.mxu0
    %v649 = vmul.f32 %v641, 0.35355338
    %v650 = vmul.f32 %v646, 0.35355338
    %v651 = vadd.f32 %v649, %v57
    %v652 = vadd.f32 %v650, %v58
    %v653 = vsel %vm244, %v651, -inf
    %654 = vmax.xlane.f32.xlu0 %v653
    %v655 = vpop.xlane.xlu0 %654
    %v656 = vsel %vm244, %v652, -inf
    %657 = vmax.xlane.f32.xlu0 %v656
    %v658 = vpop.xlane.xlu0 %657
    %v659 = vsub.f32 %v651, %v655
    %v660 = vsub.f32 %v652, %v658
    %v661 = vmul.f32 %v659, 1.442695
    %v662 = vpow.pop %v661
    %v663 = vmul.f32 %v660, 1.442695
    %v664 = vpow.pop %v663
    %v665 = vsel %vm244, %v662, 0.0
    %666 = vadd.xlane.f32.xlu0 %v665
    %v667 = vpop.xlane.xlu0 %666
    %v668 = vsel %vm244, %v664, 0.0
    %669 = vadd.xlane.f32.xlu0 %v668
    %v670 = vpop.xlane.xlu0 %669
    %v671 = vrcp.pop %v667
    %v672 = vmul.f32 %v662, %v671
    %v673 = vrcp.pop %v670
    %v674 = vmul.f32 %v664, %v673
    %675 = vrot.lane.b32.xlu0 %v142, 48
    %v676 = vpop.permute.xlu0 %675
    %677 = vrot.lane.b32.xlu0 %v147, 48
    %v678 = vpop.permute.xlu0 %677
    %v682 = vsel %vm244, %v672, 0
    %v685 = vsel %vm244, %v674, 0
    %687 = vmatprep.subr.mxu0 0.0
    %688 = vmatpush1.msra.mxu0 %v676
    %689 = vmatprep.subr.mxu0 0.0
    %690 = vmatpush1.msra.mxu0 %v678
    %691 = vmatprep.subr.mxu0 0.0
    %692 = vmatpush1.msra.mxu0 0.0
    %693 = vmatprep.subr.mxu0 0.0
    %694 = vmatpush1.msra.mxu0 0.0
    %695 = vmatprep.subr.mxu0 0.0
    %696 = vmatpush1.msra.mxu0 0.0
    %697 = vmatprep.subr.mxu0 0.0
    %698 = vmatpush1.msra.mxu0 0.0
    %699 = vmatprep.subr.mxu0 0.0
    %700 = vmatpush1.msra.mxu0 0.0
    %701 = vmatprep.subr.mxu0 0.0
    %702 = vmatpush1.msra.mxu0 0.0
    %703 = vmatprep.subr.mxu0 0.0
    %704 = vmatpush1.msra.mxu0 0.0
    %705 = vmatprep.subr.mxu0 0.0
    %706 = vmatpush1.msra.mxu0 0.0
    %707 = vmatprep.subr.mxu0 0.0
    %708 = vmatpush1.msra.mxu0 0.0
    %709 = vmatprep.subr.mxu0 0.0
    %710 = vmatpush1.msra.mxu0 0.0
    %711 = vmatprep.subr.mxu0 0.0
    %712 = vmatpush1.msra.mxu0 0.0
    %713 = vmatprep.subr.mxu0 0.0
    %714 = vmatpush1.msra.mxu0 0.0
    %715 = vmatprep.subr.mxu0 0.0
    %716 = vmatpush1.msra.mxu0 0.0
    %717 = vmatprep.subr.mxu0 0.0
    %718 = vmatpush1.msra.mxu0 0.0
    %719 = vmatprep.subr.mxu0 0.0
    %720 = vmatpush1.msra.mxu0 0.0
    %721 = vmatprep.subr.mxu0 0.0
    %722 = vmatpush1.msra.mxu0 0.0
    %723 = vmatprep.subr.mxu0 0.0
    %724 = vmatpush1.msra.mxu0 0.0
    %725 = vmatprep.subr.mxu0 0.0
    %726 = vmatpush1.msra.mxu0 0.0
    %727 = vmatprep.subr.mxu0 0.0
    %728 = vmatpush1.msra.mxu0 0.0
    %729 = vmatprep.subr.mxu0 0.0
    %730 = vmatpush1.msra.mxu0 0.0
    %731 = vmatprep.subr.mxu0 0.0
    %732 = vmatpush1.msra.mxu0 0.0
    %733 = vmatprep.subr.mxu0 0.0
    %734 = vmatpush1.msra.mxu0 0.0
    %735 = vmatprep.subr.mxu0 0.0
    %736 = vmatpush1.msra.mxu0 0.0
    %737 = vmatprep.subr.mxu0 0.0
    %738 = vmatpush1.msra.mxu0 0.0
    %739 = vmatprep.subr.mxu0 0.0
    %740 = vmatpush1.msra.mxu0 0.0
    %741 = vmatprep.subr.mxu0 0.0
    %742 = vmatpush1.msra.mxu0 0.0
    %743 = vmatprep.subr.mxu0 0.0
    %744 = vmatpush1.msra.mxu0 0.0
    %745 = vmatprep.subr.mxu0 0.0
    %746 = vmatpush1.msra.mxu0 0.0
    %747 = vmatprep.subr.mxu0 0.0
    %748 = vmatpush1.msra.mxu0 0.0
    %749 = vmatprep.subr.mxu0 0.0
    %750 = vmatpush1.msra.mxu0 0.0
    %751 = vmatprep.mubr.f32.mxu0 0.0
    %752 = vmatmul.mubr.f32.gmra.mrb[0].mxu0 %v682
    %v753 = vpop.f32.mrb[0].mxu0
    %v754 = vadd.f32 0.0, %v753
    %v755 = vpop.f32.mrb[0].mxu0
    %756 = vmatprep.mubr.f32.mxu0 0.0
    %757 = vmatmul.mubr.f32.gmra.mrb[0].mxu0 %v685
    %v758 = vpop.f32.mrb[0].mxu0
    %v759 = vadd.f32 0.0, %v758
    %v760 = vpop.f32.mrb[0].mxu0
    %761 = vdwg.mxu0
    %762 = vrot.lane.b32.xlu0 %v142, 104
    %v763 = vpop.permute.xlu0 %762
    %764 = vrot.lane.b32.xlu0 %v147, 104
    %v765 = vpop.permute.xlu0 %764
    %766 = vrot.lane.b32.xlu0 %v142, 72
    %v767 = vpop.permute.xlu0 %766
    %768 = vrot.lane.b32.xlu0 %v147, 72
    %v769 = vpop.permute.xlu0 %768
    %v770 = vsel %vm156, %v763, 0
    %v772 = vsel %vm156, %v765, 0
    %v774 = vsel %vm156, %v767, 0
    %v776 = vsel %vm156, %v769, 0
    %778 = vmatprep.subr.mxu0 0.0
    %779 = vmatpush1.xpose.msra.mxu0 %v774
    %780 = vmatprep.subr.mxu0 0.0
    %781 = vmatpush1.xpose.msra.mxu0 %v776
    %782 = vmatprep.subr.mxu0 0.0
    %783 = vmatpush1.xpose.msra.mxu0 0.0
    %784 = vmatprep.subr.mxu0 0.0
    %785 = vmatpush1.xpose.msra.mxu0 0.0
    %786 = vmatprep.subr.mxu0 0.0
    %787 = vmatpush1.xpose.msra.mxu0 0.0
    %788 = vmatprep.subr.mxu0 0.0
    %789 = vmatpush1.xpose.msra.mxu0 0.0
    %790 = vmatprep.subr.mxu0 0.0
    %791 = vmatpush1.xpose.msra.mxu0 0.0
    %792 = vmatprep.subr.mxu0 0.0
    %793 = vmatpush1.xpose.msra.mxu0 0.0
    %794 = vmatprep.subr.mxu0 0.0
    %795 = vmatpush1.xpose.msra.mxu0 0.0
    %796 = vmatprep.subr.mxu0 0.0
    %797 = vmatpush1.xpose.msra.mxu0 0.0
    %798 = vmatprep.subr.mxu0 0.0
    %799 = vmatpush1.xpose.msra.mxu0 0.0
    %800 = vmatprep.subr.mxu0 0.0
    %801 = vmatpush1.xpose.msra.mxu0 0.0
    %802 = vmatprep.subr.mxu0 0.0
    %803 = vmatpush1.xpose.msra.mxu0 0.0
    %804 = vmatprep.subr.mxu0 0.0
    %805 = vmatpush1.xpose.msra.mxu0 0.0
    %806 = vmatprep.subr.mxu0 0.0
    %807 = vmatpush1.xpose.msra.mxu0 0.0
    %808 = vmatprep.subr.mxu0 0.0
    %809 = vmatpush1.xpose.msra.mxu0 0.0
    %810 = vmatprep.subr.mxu0 0.0
    %811 = vmatpush1.xpose.msra.mxu0 0.0
    %812 = vmatprep.subr.mxu0 0.0
    %813 = vmatpush1.xpose.msra.mxu0 0.0
    %814 = vmatprep.subr.mxu0 0.0
    %815 = vmatpush1.xpose.msra.mxu0 0.0
    %816 = vmatprep.subr.mxu0 0.0
    %817 = vmatpush1.xpose.msra.mxu0 0.0
    %818 = vmatprep.subr.mxu0 0.0
    %819 = vmatpush1.xpose.msra.mxu0 0.0
    %820 = vmatprep.subr.mxu0 0.0
    %821 = vmatpush1.xpose.msra.mxu0 0.0
    %822 = vmatprep.subr.mxu0 0.0
    %823 = vmatpush1.xpose.msra.mxu0 0.0
    %824 = vmatprep.subr.mxu0 0.0
    %825 = vmatpush1.xpose.msra.mxu0 0.0
    %826 = vmatprep.subr.mxu0 0.0
    %827 = vmatpush1.xpose.msra.mxu0 0.0
    %828 = vmatprep.subr.mxu0 0.0
    %829 = vmatpush1.xpose.msra.mxu0 0.0
    %830 = vmatprep.subr.mxu0 0.0
    %831 = vmatpush1.xpose.msra.mxu0 0.0
    %832 = vmatprep.subr.mxu0 0.0
    %833 = vmatpush1.xpose.msra.mxu0 0.0
    %834 = vmatprep.subr.mxu0 0.0
    %835 = vmatpush1.xpose.msra.mxu0 0.0
    %836 = vmatprep.subr.mxu0 0.0
    %837 = vmatpush1.xpose.msra.mxu0 0.0
    %838 = vmatprep.subr.mxu0 0.0
    %839 = vmatpush1.xpose.msra.mxu0 0.0
    %840 = vmatprep.subr.mxu0 0.0
    %841 = vmatpush1.xpose.msra.mxu0 0.0
    %842 = vmatprep.mubr.f32.mxu0 0.0
    %843 = vmatmul.mubr.f32.gmra.mrb[0].mxu0 %v770
    %v844 = vpop.f32.mrb[0].mxu0
    %v845 = vadd.f32 0.0, %v844
    %v846 = vpop.f32.mrb[0].mxu0
    %847 = vmatprep.mubr.f32.mxu0 0.0
    %848 = vmatmul.mubr.f32.gmra.mrb[0].mxu0 %v772
    %v849 = vpop.f32.mrb[0].mxu0
    %v850 = vadd.f32 0.0, %v849
    %v851 = vpop.f32.mrb[0].mxu0
    %852 = vdwg.mxu0
    %v853 = vmul.f32 %v845, 0.35355338
    %v854 = vmul.f32 %v850, 0.35355338
    %v855 = vadd.f32 %v853, %v57
    %v856 = vadd.f32 %v854, %v58
    %v857 = vsel %vm244, %v855, -inf
    %858 = vmax.xlane.f32.xlu0 %v857
    %v859 = vpop.xlane.xlu0 %858
    %v860 = vsel %vm244, %v856, -inf
    %861 = vmax.xlane.f32.xlu0 %v860
    %v862 = vpop.xlane.xlu0 %861
    %v863 = vsub.f32 %v855, %v859
    %v864 = vsub.f32 %v856, %v862
    %v865 = vmul.f32 %v863, 1.442695
    %v866 = vpow.pop %v865
    %v867 = vmul.f32 %v864, 1.442695
    %v868 = vpow.pop %v867
    %v869 = vsel %vm244, %v866, 0.0
    %870 = vadd.xlane.f32.xlu0 %v869
    %v871 = vpop.xlane.xlu0 %870
    %v872 = vsel %vm244, %v868, 0.0
    %873 = vadd.xlane.f32.xlu0 %v872
    %v874 = vpop.xlane.xlu0 %873
    %v875 = vrcp.pop %v871
    %v876 = vmul.f32 %v866, %v875
    %v877 = vrcp.pop %v874
    %v878 = vmul.f32 %v868, %v877
    %879 = vrot.lane.b32.xlu0 %v142, 40
    %v880 = vpop.permute.xlu0 %879
    %881 = vrot.lane.b32.xlu0 %v147, 40
    %v882 = vpop.permute.xlu0 %881
    %v886 = vsel %vm244, %v876, 0
    %v889 = vsel %vm244, %v878, 0
    %891 = vmatprep.subr.mxu0 0.0
    %892 = vmatpush1.msra.mxu0 %v880
    %893 = vmatprep.subr.mxu0 0.0
    %894 = vmatpush1.msra.mxu0 %v882
    %895 = vmatprep.subr.mxu0 0.0
    %896 = vmatpush1.msra.mxu0 0.0
    %897 = vmatprep.subr.mxu0 0.0
    %898 = vmatpush1.msra.mxu0 0.0
    %899 = vmatprep.subr.mxu0 0.0
    %900 = vmatpush1.msra.mxu0 0.0
    %901 = vmatprep.subr.mxu0 0.0
    %902 = vmatpush1.msra.mxu0 0.0
    %903 = vmatprep.subr.mxu0 0.0
    %904 = vmatpush1.msra.mxu0 0.0
    %905 = vmatprep.subr.mxu0 0.0
    %906 = vmatpush1.msra.mxu0 0.0
    %907 = vmatprep.subr.mxu0 0.0
    %908 = vmatpush1.msra.mxu0 0.0
    %909 = vmatprep.subr.mxu0 0.0
    %910 = vmatpush1.msra.mxu0 0.0
    %911 = vmatprep.subr.mxu0 0.0
    %912 = vmatpush1.msra.mxu0 0.0
    %913 = vmatprep.subr.mxu0 0.0
    %914 = vmatpush1.msra.mxu0 0.0
    %915 = vmatprep.subr.mxu0 0.0
    %916 = vmatpush1.msra.mxu0 0.0
    %917 = vmatprep.subr.mxu0 0.0
    %918 = vmatpush1.msra.mxu0 0.0
    %919 = vmatprep.subr.mxu0 0.0
    %920 = vmatpush1.msra.mxu0 0.0
    %921 = vmatprep.subr.mxu0 0.0
    %922 = vmatpush1.msra.mxu0 0.0
    %923 = vmatprep.subr.mxu0 0.0
    %924 = vmatpush1.msra.mxu0 0.0
    %925 = vmatprep.subr.mxu0 0.0
    %926 = vmatpush1.msra.mxu0 0.0
    %927 = vmatprep.subr.mxu0 0.0
    %928 = vmatpush1.msra.mxu0 0.0
    %929 = vmatprep.subr.mxu0 0.0
    %930 = vmatpush1.msra.mxu0 0.0
    %931 = vmatprep.subr.mxu0 0.0
    %932 = vmatpush1.msra.mxu0 0.0
    %933 = vmatprep.subr.mxu0 0.0
    %934 = vmatpush1.msra.mxu0 0.0
    %935 = vmatprep.subr.mxu0 0.0
    %936 = vmatpush1.msra.mxu0 0.0
    %937 = vmatprep.subr.mxu0 0.0
    %938 = vmatpush1.msra.mxu0 0.0
    %939 = vmatprep.subr.mxu0 0.0
    %940 = vmatpush1.msra.mxu0 0.0
    %941 = vmatprep.subr.mxu0 0.0
    %942 = vmatpush1.msra.mxu0 0.0
    %943 = vmatprep.subr.mxu0 0.0
    %944 = vmatpush1.msra.mxu0 0.0
    %945 = vmatprep.subr.mxu0 0.0
    %946 = vmatpush1.msra.mxu0 0.0
    %947 = vmatprep.subr.mxu0 0.0
    %948 = vmatpush1.msra.mxu0 0.0
    %949 = vmatprep.subr.mxu0 0.0
    %950 = vmatpush1.msra.mxu0 0.0
    %951 = vmatprep.subr.mxu0 0.0
    %952 = vmatpush1.msra.mxu0 0.0
    %953 = vmatprep.subr.mxu0 0.0
    %954 = vmatpush1.msra.mxu0 0.0
    %955 = vmatprep.mubr.f32.mxu0 0.0
    %956 = vmatmul.mubr.f32.gmra.mrb[0].mxu0 %v886
    %v957 = vpop.f32.mrb[0].mxu0
    %v958 = vadd.f32 0.0, %v957
    %v959 = vpop.f32.mrb[0].mxu0
    %960 = vmatprep.mubr.f32.mxu0 0.0
    %961 = vmatmul.mubr.f32.gmra.mrb[0].mxu0 %v889
    %v962 = vpop.f32.mrb[0].mxu0
    %v963 = vadd.f32 0.0, %v962
    %v964 = vpop.f32.mrb[0].mxu0
    %965 = vdwg.mxu0
    %968 = vrot.lane.b32.xlu0 %v550, 8
    %v969 = vpop.permute.xlu0 %968
    %970 = vrot.lane.b32.xlu0 %v555, 8
    %v971 = vpop.permute.xlu0 %970
    %976 = vrot.lane.b32.xlu0 %v754, 16
    %v977 = vpop.permute.xlu0 %976
    %978 = vrot.lane.b32.xlu0 %v759, 16
    %v979 = vpop.permute.xlu0 %978
    %984 = vrot.lane.b32.xlu0 %v958, 24
    %v985 = vpop.permute.xlu0 %984
    %986 = vrot.lane.b32.xlu0 %v963, 24
    %v987 = vpop.permute.xlu0 %986
    %v990 = vsel %vm156, %v346, %v969
    %v991 = vsel %vm156, %v351, %v971
    %v992 = vsel %vm244, %v990, %v977
    %v993 = vsel %vm244, %v991, %v979
    %vm994 = vcmask 195584
    %v995 = vsel %vm994, %v992, %v985
    %v996 = vsel %vm994, %v993, %v987
    %v997 = vld [vmem:[%s3] sm:$0xff]
    %v998 = vld [vmem:[%s3 + $0x8] sm:$0xff]
    %v999 = vld [vmem:[%s3 + $0x10] sm:$0xff]
    %v1000 = vld [vmem:[%s3 + $0x18] sm:$0xff]
    %v1001 = vlaneseq
    %v1002 = vshrl.u32 %v1001, 7
    %v1003 = vsub.s32 1, %v1002
    %v1004 = vrot.slane %v59, %v1003
    %v1006 = vsel %vm68, %v995, 0
    %v1009 = vsel %vm68, %v996, 0
    %1011 = vmatprep.subr.mxu0 0.0
    %1012 = vmatpush1.msra.mxu0 %v997
    %1013 = vmatprep.subr.mxu0 0.0
    %1014 = vmatpush1.msra.mxu0 %v998
    %1015 = vmatprep.subr.mxu0 0.0
    %1016 = vmatpush1.msra.mxu0 %v999
    %1017 = vmatprep.subr.mxu0 0.0
    %1018 = vmatpush1.msra.mxu0 %v1000
    %1019 = vmatprep.subr.mxu0 0.0
    %1020 = vmatpush1.msra.mxu0 0.0
    %1021 = vmatprep.subr.mxu0 0.0
    %1022 = vmatpush1.msra.mxu0 0.0
    %1023 = vmatprep.subr.mxu0 0.0
    %1024 = vmatpush1.msra.mxu0 0.0
    %1025 = vmatprep.subr.mxu0 0.0
    %1026 = vmatpush1.msra.mxu0 0.0
    %1027 = vmatprep.subr.mxu0 0.0
    %1028 = vmatpush1.msra.mxu0 0.0
    %1029 = vmatprep.subr.mxu0 0.0
    %1030 = vmatpush1.msra.mxu0 0.0
    %1031 = vmatprep.subr.mxu0 0.0
    %1032 = vmatpush1.msra.mxu0 0.0
    %1033 = vmatprep.subr.mxu0 0.0
    %1034 = vmatpush1.msra.mxu0 0.0
    %1035 = vmatprep.subr.mxu0 0.0
    %1036 = vmatpush1.msra.mxu0 0.0
    %1037 = vmatprep.subr.mxu0 0.0
    %1038 = vmatpush1.msra.mxu0 0.0
    %1039 = vmatprep.subr.mxu0 0.0
    %1040 = vmatpush1.msra.mxu0 0.0
    %1041 = vmatprep.subr.mxu0 0.0
    %1042 = vmatpush1.msra.mxu0 0.0
    %1043 = vmatprep.subr.mxu0 0.0
    %1044 = vmatpush1.msra.mxu0 0.0
    %1045 = vmatprep.subr.mxu0 0.0
    %1046 = vmatpush1.msra.mxu0 0.0
    %1047 = vmatprep.subr.mxu0 0.0
    %1048 = vmatpush1.msra.mxu0 0.0
    %1049 = vmatprep.subr.mxu0 0.0
    %1050 = vmatpush1.msra.mxu0 0.0
    %1051 = vmatprep.subr.mxu0 0.0
    %1052 = vmatpush1.msra.mxu0 0.0
    %1053 = vmatprep.subr.mxu0 0.0
    %1054 = vmatpush1.msra.mxu0 0.0
    %1055 = vmatprep.subr.mxu0 0.0
    %1056 = vmatpush1.msra.mxu0 0.0
    %1057 = vmatprep.subr.mxu0 0.0
    %1058 = vmatpush1.msra.mxu0 0.0
    %1059 = vmatprep.subr.mxu0 0.0
    %1060 = vmatpush1.msra.mxu0 0.0
    %1061 = vmatprep.subr.mxu0 0.0
    %1062 = vmatpush1.msra.mxu0 0.0
    %1063 = vmatprep.subr.mxu0 0.0
    %1064 = vmatpush1.msra.mxu0 0.0
    %1065 = vmatprep.subr.mxu0 0.0
    %1066 = vmatpush1.msra.mxu0 0.0
    %1067 = vmatprep.subr.mxu0 0.0
    %1068 = vmatpush1.msra.mxu0 0.0
    %1069 = vmatprep.subr.mxu0 0.0
    %1070 = vmatpush1.msra.mxu0 0.0
    %1071 = vmatprep.subr.mxu0 0.0
    %1072 = vmatpush1.msra.mxu0 0.0
    %1073 = vmatprep.subr.mxu0 0.0
    %1074 = vmatpush1.msra.mxu0 0.0
    %1075 = vmatprep.mubr.f32.mxu0 0.0
    %1076 = vmatmul.mubr.f32.gmra.mrb[0].mxu0 %v1006
    %v1077 = vpop.f32.mrb[0].mxu0
    %v1078 = vadd.f32 %v1004, %v1077
    %v1079 = vpop.f32.mrb[0].mxu0
    %1080 = vmatprep.mubr.f32.mxu0 0.0
    %1081 = vmatmul.mubr.f32.gmra.mrb[0].mxu0 %v1009
    %v1082 = vpop.f32.mrb[0].mxu0
    %v1083 = vadd.f32 %v1004, %v1082
    %v1084 = vpop.f32.mrb[0].mxu0
    %1085 = vdwg.mxu0
    %v1086 = vadd.f32 %v1078, %v55
    %v1087 = vadd.f32 %v1083, %v56
    %v1088 = vsel %vm68, %v1086, 0.0
    %1089 = vadd.xlane.f32.xlu0 %v1088
    %v1090 = vpop.xlane.xlu0 %1089
    %v1091 = vsel %vm68, %v1087, 0.0
    %1092 = vadd.xlane.f32.xlu0 %v1091
    %v1093 = vpop.xlane.xlu0 %1092
    %v1094 = vrcp.pop 32.0
    %v1095 = vmul.f32 %v1090, %v1094
    %v1096 = vmul.f32 %v1093, %v1094
    %v1097 = vsub.f32 %v1086, %v1095
    %v1098 = vsub.f32 %v1087, %v1096
    %v1099 = vmul.f32 %v1097, %v1097
    %v1100 = vmul.f32 %v1098, %v1098
    %v1101 = vsel %vm68, %v1099, 0.0
    %1102 = vadd.xlane.f32.xlu0 %v1101
    %v1103 = vpop.xlane.xlu0 %1102
    %v1104 = vsel %vm68, %v1100, 0.0
    %1105 = vadd.xlane.f32.xlu0 %v1104
    %v1106 = vpop.xlane.xlu0 %1105
    %v1107 = vmul.f32 %v1103, %v1094
    %v1108 = vmul.f32 %v1106, %v1094
    %v1109 = vadd.f32 %v1107, 1e-12
    %v1110 = vadd.f32 %v1108, 1e-12
    %v1111 = vrsqrt.pop %v1109
    %v1112 = vmul.f32 %v1109, %v1111
    %vm1113 = vcmp.eq.f32.partialorder %v1109, inf
    %v1114 = vsel %vm1113, %v1109, %v1112
    %vm1115 = vcmp.eq.f32.partialorder %v1109, 0.0
    %v1116 = vand.u32 %v1109, 2147483648
    %v1117 = vsel %vm1115, %v1116, %v1114
    %v1118 = vrsqrt.pop %v1110
    %v1119 = vmul.f32 %v1110, %v1118
    %vm1120 = vcmp.eq.f32.partialorder %v1110, inf
    %v1121 = vsel %vm1120, %v1110, %v1119
    %vm1122 = vcmp.eq.f32.partialorder %v1110, 0.0
    %v1123 = vand.u32 %v1110, 2147483648
    %v1124 = vsel %vm1122, %v1123, %v1121
    %v1125 = vrcp.pop %v1117
    %v1126 = vmul.f32 %v1097, %v1125
    %v1127 = vrcp.pop %v1124
    %v1128 = vmul.f32 %v1098, %v1127
    %v1129 = vlaneseq
    %v1130 = vshrl.u32 %v1129, 7
    %v1131 = vsub.s32 2, %v1130
    %v1132 = vrot.slane %v59, %v1131
    %v1133 = vmul.f32 %v1132, %v1126
    %v1134 = vmul.f32 %v1132, %v1128
    %v1135 = vlaneseq
    %v1136 = vshrl.u32 %v1135, 7
    %v1137 = vsub.s32 3, %v1136
    %v1138 = vrot.slane %v59, %v1137
    %v1139 = vadd.f32 %v1133, %v1138
    %v1140 = vadd.f32 %v1134, %v1138
    %v1141 = vld [vmem:[%s4] sm:$0xff]
    %v1142 = vld [vmem:[%s4 + $0x8] sm:$0xff]
    %v1143 = vld [vmem:[%s4 + $0x10] sm:$0xff]
    %v1144 = vld [vmem:[%s4 + $0x18] sm:$0xff]
    %v1145 = vlaneseq
    %v1146 = vshrl.u32 %v1145, 7
    %v1147 = vsub.s32 4, %v1146
    %v1148 = vrot.slane %v59, %v1147
    %v1150 = vsel %vm68, %v1139, 0
    %v1153 = vsel %vm68, %v1140, 0
    %1155 = vmatprep.subr.mxu0 0.0
    %1156 = vmatpush1.msra.mxu0 %v1141
    %1157 = vmatprep.subr.mxu0 0.0
    %1158 = vmatpush1.msra.mxu0 %v1142
    %1159 = vmatprep.subr.mxu0 0.0
    %1160 = vmatpush1.msra.mxu0 %v1143
    %1161 = vmatprep.subr.mxu0 0.0
    %1162 = vmatpush1.msra.mxu0 %v1144
    %1163 = vmatprep.subr.mxu0 0.0
    %1164 = vmatpush1.msra.mxu0 0.0
    %1165 = vmatprep.subr.mxu0 0.0
    %1166 = vmatpush1.msra.mxu0 0.0
    %1167 = vmatprep.subr.mxu0 0.0
    %1168 = vmatpush1.msra.mxu0 0.0
    %1169 = vmatprep.subr.mxu0 0.0
    %1170 = vmatpush1.msra.mxu0 0.0
    %1171 = vmatprep.subr.mxu0 0.0
    %1172 = vmatpush1.msra.mxu0 0.0
    %1173 = vmatprep.subr.mxu0 0.0
    %1174 = vmatpush1.msra.mxu0 0.0
    %1175 = vmatprep.subr.mxu0 0.0
    %1176 = vmatpush1.msra.mxu0 0.0
    %1177 = vmatprep.subr.mxu0 0.0
    %1178 = vmatpush1.msra.mxu0 0.0
    %1179 = vmatprep.subr.mxu0 0.0
    %1180 = vmatpush1.msra.mxu0 0.0
    %1181 = vmatprep.subr.mxu0 0.0
    %1182 = vmatpush1.msra.mxu0 0.0
    %1183 = vmatprep.subr.mxu0 0.0
    %1184 = vmatpush1.msra.mxu0 0.0
    %1185 = vmatprep.subr.mxu0 0.0
    %1186 = vmatpush1.msra.mxu0 0.0
    %1187 = vmatprep.subr.mxu0 0.0
    %1188 = vmatpush1.msra.mxu0 0.0
    %1189 = vmatprep.subr.mxu0 0.0
    %1190 = vmatpush1.msra.mxu0 0.0
    %1191 = vmatprep.subr.mxu0 0.0
    %1192 = vmatpush1.msra.mxu0 0.0
    %1193 = vmatprep.subr.mxu0 0.0
    %1194 = vmatpush1.msra.mxu0 0.0
    %1195 = vmatprep.subr.mxu0 0.0
    %1196 = vmatpush1.msra.mxu0 0.0
    %1197 = vmatprep.subr.mxu0 0.0
    %1198 = vmatpush1.msra.mxu0 0.0
    %1199 = vmatprep.subr.mxu0 0.0
    %1200 = vmatpush1.msra.mxu0 0.0
    %1201 = vmatprep.subr.mxu0 0.0
    %1202 = vmatpush1.msra.mxu0 0.0
    %1203 = vmatprep.subr.mxu0 0.0
    %1204 = vmatpush1.msra.mxu0 0.0
    %1205 = vmatprep.subr.mxu0 0.0
    %1206 = vmatpush1.msra.mxu0 0.0
    %1207 = vmatprep.subr.mxu0 0.0
    %1208 = vmatpush1.msra.mxu0 0.0
    %1209 = vmatprep.subr.mxu0 0.0
    %1210 = vmatpush1.msra.mxu0 0.0
    %1211 = vmatprep.subr.mxu0 0.0
    %1212 = vmatpush1.msra.mxu0 0.0
    %1213 = vmatprep.subr.mxu0 0.0
    %1214 = vmatpush1.msra.mxu0 0.0
    %1215 = vmatprep.subr.mxu0 0.0
    %1216 = vmatpush1.msra.mxu0 0.0
    %1217 = vmatprep.subr.mxu0 0.0
    %1218 = vmatpush1.msra.mxu0 0.0
    %1219 = vmatprep.mubr.f32.mxu0 0.0
    %1220 = vmatmul.mubr.f32.gmra.mrb[0].mxu0 %v1150
    %v1221 = vpop.f32.mrb[0].mxu0
    %v1222 = vadd.f32 %v1148, %v1221
    %v1223 = vpop.f32.mrb[0].mxu0
    %1224 = vmatprep.mubr.f32.mxu0 0.0
    %1225 = vmatmul.mubr.f32.gmra.mrb[0].mxu0 %v1153
    %v1226 = vpop.f32.mrb[0].mxu0
    %v1227 = vadd.f32 %v1148, %v1226
    %v1228 = vpop.f32.mrb[0].mxu0
    %1229 = vdwg.mxu0
    %v1230 = vmul.f32 %v1222, 0.5
    %v1231 = vmul.f32 %v1227, 0.5
    %v1232 = vrcp.pop 1.4142135
    %v1233 = vmul.f32 %v1222, %v1232
    %v1234 = vmul.f32 %v1227, %v1232
    %v1235 = verf.f32.pop %v1233
    %v1236 = verf.f32.pop %v1234
    %v1237 = vadd.f32 %v1235, 1.0
    %v1238 = vadd.f32 %v1236, 1.0
    %v1239 = vmul.f32 %v1230, %v1237
    %v1240 = vmul.f32 %v1231, %v1238
    %v1241 = vld [vmem:[%s5] sm:$0xff]
    %v1242 = vld [vmem:[%s5 + $0x8] sm:$0xff]
    %v1243 = vld [vmem:[%s5 + $0x10] sm:$0xff]
    %v1244 = vld [vmem:[%s5 + $0x18] sm:$0xff]
    %v1245 = vld [vmem:[%s5 + $0x20] sm:$0xff]
    %v1246 = vld [vmem:[%s5 + $0x28] sm:$0xff]
    %v1247 = vld [vmem:[%s5 + $0x30] sm:$0xff]
    %v1248 = vld [vmem:[%s5 + $0x38] sm:$0xff]
    %v1249 = vlaneseq
    %v1250 = vshrl.u32 %v1249, 7
    %v1251 = vsub.s32 5, %v1250
    %v1252 = vrot.slane %v59, %v1251
    %vm1253 = vcmask 523264
    %v1255 = vsel %vm1253, %v1239, 0
    %v1258 = vsel %vm1253, %v1240, 0
    %1260 = vmatprep.subr.mxu0 0.0
    %1261 = vmatpush1.msra.mxu0 %v1241
    %1262 = vmatprep.subr.mxu0 0.0
    %1263 = vmatpush1.msra.mxu0 %v1242
    %1264 = vmatprep.subr.mxu0 0.0
    %1265 = vmatpush1.msra.mxu0 %v1243
    %1266 = vmatprep.subr.mxu0 0.0
    %1267 = vmatpush1.msra.mxu0 %v1244
    %1268 = vmatprep.subr.mxu0 0.0
    %1269 = vmatpush1.msra.mxu0 %v1245
    %1270 = vmatprep.subr.mxu0 0.0
    %1271 = vmatpush1.msra.mxu0 %v1246
    %1272 = vmatprep.subr.mxu0 0.0
    %1273 = vmatpush1.msra.mxu0 %v1247
    %1274 = vmatprep.subr.mxu0 0.0
    %1275 = vmatpush1.msra.mxu0 %v1248
    %1276 = vmatprep.subr.mxu0 0.0
    %1277 = vmatpush1.msra.mxu0 0.0
    %1278 = vmatprep.subr.mxu0 0.0
    %1279 = vmatpush1.msra.mxu0 0.0
    %1280 = vmatprep.subr.mxu0 0.0
    %1281 = vmatpush1.msra.mxu0 0.0
    %1282 = vmatprep.subr.mxu0 0.0
    %1283 = vmatpush1.msra.mxu0 0.0
    %1284 = vmatprep.subr.mxu0 0.0
    %1285 = vmatpush1.msra.mxu0 0.0
    %1286 = vmatprep.subr.mxu0 0.0
    %1287 = vmatpush1.msra.mxu0 0.0
    %1288 = vmatprep.subr.mxu0 0.0
    %1289 = vmatpush1.msra.mxu0 0.0
    %1290 = vmatprep.subr.mxu0 0.0
    %1291 = vmatpush1.msra.mxu0 0.0
    %1292 = vmatprep.subr.mxu0 0.0
    %1293 = vmatpush1.msra.mxu0 0.0
    %1294 = vmatprep.subr.mxu0 0.0
    %1295 = vmatpush1.msra.mxu0 0.0
    %1296 = vmatprep.subr.mxu0 0.0
    %1297 = vmatpush1.msra.mxu0 0.0
    %1298 = vmatprep.subr.mxu0 0.0
    %1299 = vmatpush1.msra.mxu0 0.0
    %1300 = vmatprep.subr.mxu0 0.0
    %1301 = vmatpush1.msra.mxu0 0.0
    %1302 = vmatprep.subr.mxu0 0.0
    %1303 = vmatpush1.msra.mxu0 0.0
    %1304 = vmatprep.subr.mxu0 0.0
    %1305 = vmatpush1.msra.mxu0 0.0
    %1306 = vmatprep.subr.mxu0 0.0
    %1307 = vmatpush1.msra.mxu0 0.0
    %1308 = vmatprep.subr.mxu0 0.0
    %1309 = vmatpush1.msra.mxu0 0.0
    %1310 = vmatprep.subr.mxu0 0.0
    %1311 = vmatpush1.msra.mxu0 0.0
    %1312 = vmatprep.subr.mxu0 0.0
    %1313 = vmatpush1.msra.mxu0 0.0
    %1314 = vmatprep.subr.mxu0 0.0
    %1315 = vmatpush1.msra.mxu0 0.0
    %1316 = vmatprep.subr.mxu0 0.0
    %1317 = vmatpush1.msra.mxu0 0.0
    %1318 = vmatprep.subr.mxu0 0.0
    %1319 = vmatpush1.msra.mxu0 0.0
    %1320 = vmatprep.subr.mxu0 0.0
    %1321 = vmatpush1.msra.mxu0 0.0
    %1322 = vmatprep.subr.mxu0 0.0
    %1323 = vmatpush1.msra.mxu0 0.0
    %1324 = vmatprep.mubr.f32.mxu0 0.0
    %1325 = vmatmul.mubr.f32.gmra.mrb[0].mxu0 %v1255
    %v1326 = vpop.f32.mrb[0].mxu0
    %v1327 = vadd.f32 %v1252, %v1326
    %v1328 = vpop.f32.mrb[0].mxu0
    %1329 = vmatprep.mubr.f32.mxu0 0.0
    %1330 = vmatmul.mubr.f32.gmra.mrb[0].mxu0 %v1258
    %v1331 = vpop.f32.mrb[0].mxu0
    %v1332 = vadd.f32 %v1252, %v1331
    %v1333 = vpop.f32.mrb[0].mxu0
    %1334 = vdwg.mxu0
    %v1335 = vadd.f32 %v1327, %v1139
    %v1336 = vadd.f32 %v1332, %v1140
    %v1337 = vsel %vm68, %v1335, 0.0
    %1338 = vadd.xlane.f32.xlu0 %v1337
    %v1339 = vpop.xlane.xlu0 %1338
    %v1340 = vsel %vm68, %v1336, 0.0
    %1341 = vadd.xlane.f32.xlu0 %v1340
    %v1342 = vpop.xlane.xlu0 %1341
    %v1343 = vmul.f32 %v1339, %v1094
    %v1344 = vmul.f32 %v1342, %v1094
    %v1345 = vsub.f32 %v1335, %v1343
    %v1346 = vsub.f32 %v1336, %v1344
    %v1347 = vmul.f32 %v1345, %v1345
    %v1348 = vmul.f32 %v1346, %v1346
    %v1349 = vsel %vm68, %v1347, 0.0
    %1350 = vadd.xlane.f32.xlu0 %v1349
    %v1351 = vpop.xlane.xlu0 %1350
    %v1352 = vsel %vm68, %v1348, 0.0
    %1353 = vadd.xlane.f32.xlu0 %v1352
    %v1354 = vpop.xlane.xlu0 %1353
    %v1355 = vmul.f32 %v1351, %v1094
    %v1356 = vmul.f32 %v1354, %v1094
    %v1357 = vadd.f32 %v1355, 1e-12
    %v1358 = vadd.f32 %v1356, 1e-12
    %v1359 = vrsqrt.pop %v1357
    %v1360 = vmul.f32 %v1357, %v1359
    %vm1361 = vcmp.eq.f32.partialorder %v1357, inf
    %v1362 = vsel %vm1361, %v1357, %v1360
    %vm1363 = vcmp.eq.f32.partialorder %v1357, 0.0
    %v1364 = vand.u32 %v1357, 2147483648
    %v1365 = vsel %vm1363, %v1364, %v1362
    %v1366 = vrsqrt.pop %v1358
    %v1367 = vmul.f32 %v1358, %v1366
    %vm1368 = vcmp.eq.f32.partialorder %v1358, inf
    %v1369 = vsel %vm1368, %v1358, %v1367
    %vm1370 = vcmp.eq.f32.partialorder %v1358, 0.0
    %v1371 = vand.u32 %v1358, 2147483648
    %v1372 = vsel %vm1370, %v1371, %v1369
    %v1373 = vrcp.pop %v1365
    %v1374 = vmul.f32 %v1345, %v1373
    %v1375 = vrcp.pop %v1372
    %v1376 = vmul.f32 %v1346, %v1375
    %v1377 = vlaneseq
    %v1378 = vshrl.u32 %v1377, 7
    %v1379 = vsub.s32 6, %v1378
    %v1380 = vrot.slane %v59, %v1379
    %v1381 = vmul.f32 %v1380, %v1374
    %v1382 = vmul.f32 %v1380, %v1376
    %v1383 = vlaneseq
    %v1384 = vshrl.u32 %v1383, 7
    %v1385 = vsub.s32 7, %v1384
    %v1386 = vrot.slane %v59, %v1385
    %v1387 = vadd.f32 %v1381, %v1386
    %v1388 = vadd.f32 %v1382, %v1386
    %1389 = vst.msk [vmem:[#allocation7] sm:$0xff] %vm68, %v1387
    %1390 = vst.msk [vmem:[#allocation7 + $0x8] sm:$0xff] %vm68, %v1388
    // Predicated region
    $region38: #{tpu_custom_call.1} parent=1 // pred_check
      _
    $region39: #{tpu_custom_call.1} parent=1 // pred_check_branch
      %1392 = sbr.rel (0) target = $region41
    $region40: #{tpu_custom_call.1} parent=1 // pred_region
      %s1394 = ssub.s32 256, 256
      %1395 = vsyncadd [#allocation4], %s1394
      %s1396 = sshll.u32 [#allocation7], 4
      %s1397 = int_to_ptr.vmem [resolvable:$true] %s1396
      %1402 = dma.vmem_to_hbm [thread:$0]  %s1397, 256, %s7, [#allocation4], 128, 128, 8
    $region41: #{tpu_custom_call.1} parent=1 // pred_fallthru
      _
    // Predicated region
    $region42: #{tpu_custom_call.1} parent=1 // pred_check
      _
    $region43: #{tpu_custom_call.1} parent=1 // pred_check_branch
      %1404 = sbr.rel (0) target = $region45
    $region44: #{tpu_custom_call.1} parent=1 // pred_region
      %1405 = dma.done [#allocation4], 256
    $region45: #{tpu_custom_call.1} parent=1 // pred_fallthru
      _
    %1406 = vsyncpa [#allocation3], 1
    %1407 = vsyncpa [#allocation6], 1
    %1408 = vsyncpa [#allocation4], 1

</llo_original>
